<compile_context>
chip_gen: v5e
topology: v5e:2x2
jax: 0.10.0
libtpu: 0.0.40
codegen_flags: <defaults>
</compile_context>

<pallas_src>
import functools
import math

import jax
import jax.numpy as jnp
import numpy as np
from jax.experimental import pallas as pl
from jax.experimental.pallas import tpu as pltpu


def _layer_norm(x, gamma, beta):
    # Matches the custom PyTorch LayerNorm exactly: unbiased std (ddof=1) and
    # eps added to *std* (not variance). Intentionally NOT standard nn.LayerNorm
    # semantics — do not "fix".
    n = x.shape[-1]
    mean = jnp.mean(x, axis=-1, keepdims=True)
    c = x - mean
    var = jnp.sum(c * c, axis=-1, keepdims=True) * (1.0 / (n - 1))
    inv = pl.reciprocal(jnp.sqrt(var) + 1e-6, approx=True)   # EUP, not VALU
    return gamma * c * inv + beta


def encoder_layer_kernel(q_ref, k_ref, v_ref, bias_ref,
                         wq_ref, wc_ref,
                         ln1_g_ref, ln1_b_ref,
                         w1_ref, b1_ref, w2_ref, b2_ref,
                         ln2_g_ref, ln2_b_ref,
                         o_ref,
                         *, h, d_head, bt, seq, mxu_dtype):
    f32 = jnp.float32
    D = h * d_head

    q = q_ref[...]            # (bt, L, D)
    k = k_ref[...]            # (bt, L, D)
    v = v_ref[...]            # (bt, L, D)
    bias = bias_ref[...]      # (bt, L, L) additive mask bias (0 / -1e30)

    def mm(a, b):             # 2-D MXU matmul, f32 accumulation
        return jnp.dot(a.astype(mxu_dtype), b.astype(mxu_dtype),
                       preferred_element_type=f32)

    # ---------------- multi-head attention ----------------
    # fc_query over all bt*L rows in one matmul.
    q2d = q.reshape(bt * seq, D)
    pq = mm(q2d, wq_ref[...]).reshape(bt, seq, D)

    wc = wc_ref[...]
    scale = 1.0 / math.sqrt(d_head)

    # fc_concat projection accumulated head-by-head (no concat, no .T).
    # NOTE: per the original module, key/value heads come from the *raw* k / v.
    attn2d = jnp.zeros((bt * seq, D), dtype=f32)
    for head in range(h):
        lo = head * d_head
        hi = lo + d_head
        qh = pq[:, :, lo:hi]                       # (bt, L, dh)
        kh = k[:, :, lo:hi]                        # (bt, L, dh)
        vh = v[:, :, lo:hi]                        # (bt, L, dh)
        s = jnp.einsum('bqd,bkd->bqk',
                       qh.astype(mxu_dtype), kh.astype(mxu_dtype),
                       preferred_element_type=f32) * scale + bias   # (bt, L, L)
        m = jnp.max(s, axis=-1, keepdims=True)
        e = jnp.exp(s - m)
        p = e * pl.reciprocal(jnp.sum(e, axis=-1, keepdims=True), approx=True)
        o_h = jnp.einsum('bqk,bkd->bqd',
                         p.astype(mxu_dtype), vh.astype(mxu_dtype),
                         preferred_element_type=f32)                # (bt, L, dh)
        attn2d = attn2d + mm(o_h.reshape(bt * seq, d_head), wc[lo:hi, :])

    # residual + LayerNorm 1 (dropout = identity)
    x1 = _layer_norm(q2d + attn2d, ln1_g_ref[...], ln1_b_ref[...])   # (bt*L, D)

    # ---------------- position-wise feed forward ----------------
    hdn = jnp.maximum(mm(x1, w1_ref[...]) + b1_ref[...], 0.0)        # (bt*L, d_ff)
    ff = mm(hdn, w2_ref[...]) + b2_ref[...]                          # (bt*L, D)
    out = _layer_norm(ff + x1, ln2_g_ref[...], ln2_b_ref[...])

    o_ref[...] = out.reshape(bt, seq, D)


def encoder_layer(q, k, v, mask_bool, params, *, h,
                  batch_tile=None, mxu_dtype=jnp.float32):
    B, L, D = q.shape
    d_ff = params["w1"].shape[1]
    d_head = D // h
    bt = B if batch_tile is None else batch_tile
    assert B % bt == 0, "batch must be divisible by the batch tile"

    # Additive mask bias built once in the wrapper (finite, not -inf).
    bias = jnp.where(jnp.broadcast_to(mask_bool, (B, L, L)),
                     jnp.float32(-1e30), jnp.float32(0.0))

    kernel = functools.partial(encoder_layer_kernel, h=h, d_head=d_head,
                               bt=bt, seq=L, mxu_dtype=mxu_dtype)

    tile3 = lambda i: (i, 0, 0)
    whole = lambda i: (0, 0)

    in_specs = [
        pl.BlockSpec((bt, L, D), tile3),       # q
        pl.BlockSpec((bt, L, D), tile3),       # k
        pl.BlockSpec((bt, L, D), tile3),       # v
        pl.BlockSpec((bt, L, L), tile3),       # additive mask bias
        pl.BlockSpec((D, D), whole),           # Wq (in, out)
        pl.BlockSpec((D, D), whole),           # Wc (in, out)
        pl.BlockSpec((1, D), whole),           # LN1 gamma
        pl.BlockSpec((1, D), whole),           # LN1 beta
        pl.BlockSpec((D, d_ff), whole),        # W1
        pl.BlockSpec((1, d_ff), whole),        # b1
        pl.BlockSpec((d_ff, D), whole),        # W2
        pl.BlockSpec((1, D), whole),           # b2
        pl.BlockSpec((1, D), whole),           # LN2 gamma
        pl.BlockSpec((1, D), whole),           # LN2 beta
    ]
    out_spec = pl.BlockSpec((bt, L, D), tile3)

    # TODO(synk): on v7x with large D/d_ff, add pipeline_mode=pl.Buffered(1) to
    # the constant-index weight specs and query-tile the attention (flash-style
    # online softmax) so the working set fits 64 MiB VMEM; unnecessary at this
    # configuration.
    return pl.pallas_call(
        kernel,
        out_shape=jax.ShapeDtypeStruct((B, L, D), jnp.float32),
        grid_spec=pltpu.PrefetchScalarGridSpec(
            num_scalar_prefetch=0,
            grid=(B // bt,),
            in_specs=in_specs,
            out_specs=out_spec,
        ),
        compiler_params=pltpu.CompilerParams(
            dimension_semantics=("parallel",),
            vmem_limit_bytes=32 * 1024 * 1024,   # explicit scoped-VMEM budget
        ),
    )(q, k, v, bias,
      params["wq"], params["wc"],
      params["g1"], params["beta1"],
      params["w1"], params["b1"], params["w2"], params["b2"],
      params["g2"], params["beta2"])


def reference(q, k, v, mask_bool, params, *, h):
    """Pure-JAX reference replicating the PyTorch forward exactly."""
    B, L, D = q.shape
    dh = D // h
    pq = q @ params["wq"]                                   # (B, L, D)

    def split_heads(x):  # (B, L, D) -> (B, h, L, dh)
        return x.reshape(B, L, h, dh).transpose(0, 2, 1, 3)

    qh = split_heads(pq)
    kh = split_heads(k)        # raw key (original module's quirk)
    vh = split_heads(v)        # raw value
    s = jnp.einsum("bhqd,bhkd->bhqk", qh, kh) / math.sqrt(dh)
    s = jnp.where(mask_bool[:, None, :, :], -jnp.inf, s)
    a = jax.nn.softmax(s, axis=-1)
    o = jnp.einsum("bhqk,bhkd->bhqd", a, vh)
    o = o.transpose(0, 2, 1, 3).reshape(B, L, D) @ params["wc"]

    def ln(x, g, b):
        mean = jnp.mean(x, axis=-1, keepdims=True)
        std = jnp.sqrt(jnp.sum((x - mean) ** 2, axis=-1, keepdims=True) / (D - 1))
        return g * (x - mean) / (std + 1e-6) + b

    x1 = ln(q + o, params["g1"], params["beta1"])
    hdn = jnp.maximum(x1 @ params["w1"] + params["b1"], 0.0)
    ff = hdn @ params["w2"] + params["b2"]
    return ln(ff + x1, params["g2"], params["beta2"])


if __name__ == "__main__":
    B, L, D, H, DFF = 2, 8, 32, 4, 64

    key = jax.random.PRNGKey(0)
    ks = jax.random.split(key, 10)

    q = jax.random.normal(ks[0], (B, L, D), jnp.float32)
    k = jax.random.normal(ks[1], (B, L, D), jnp.float32)
    v = jax.random.normal(ks[2], (B, L, D), jnp.float32)

    # mask: True == masked. Mask the last two key positions for batch 1 only
    # (never a fully-masked row, matching typical padding masks).
    mask_np = np.zeros((B, L, L), dtype=bool)
    mask_np[1, :, -2:] = True
    mask_bool = jnp.asarray(mask_np)

    params = {
        # attention projections (bias=False); stored as (in, out)
        "wq": 0.1 * jax.random.normal(ks[3], (D, D), jnp.float32),
        "wc": 0.1 * jax.random.normal(ks[4], (D, D), jnp.float32),
        # LayerNorm of the attention sublayer (module init: ones / zeros)
        "g1": jnp.ones((1, D), jnp.float32),
        "beta1": jnp.zeros((1, D), jnp.float32),
        # feed forward
        "w1": 0.1 * jax.random.normal(ks[5], (D, DFF), jnp.float32),
        "b1": 0.1 * jax.random.normal(ks[6], (1, DFF), jnp.float32),
        "w2": 0.1 * jax.random.normal(ks[7], (DFF, D), jnp.float32),
        "b2": 0.1 * jax.random.normal(ks[8], (1, D), jnp.float32),
        # LayerNorm of the feed-forward sublayer
        "g2": jnp.ones((1, D), jnp.float32),
        "beta2": jnp.zeros((1, D), jnp.float32),
    }
    # TODO(synk): fc_key / fc_value weights exist in the PyTorch module but are
    # dead parameters in its forward (raw key/value are used), so they are omitted.

    out = encoder_layer(q, k, v, mask_bool, params, h=H)     # f32 MXU inputs here;
    out = jax.block_until_ready(out)                         # pass mxu_dtype=jnp.bfloat16 on v6e/v7x

    ref = reference(q, k, v, mask_bool, params, h=H)
    # Tolerance accommodates the approximate-reciprocal EUP path used for the
    # softmax denominator and layer-norm 1/(std+eps) (~1e-3 relative worst case);
    # a genuine bug shows up at >=1e-1.
    np.testing.assert_allclose(np.asarray(out), np.asarray(ref), atol=1e-2, rtol=1e-2)

    print("KERNEL_OK")
</pallas_src>

<mosaic_0001>
module attributes {stable_mosaic.version = 11 : i64} {
  func.func @encoder_layer_kernel(%arg0: i32, %arg1: memref<2x8x32xf32, #tpu.memory_space<vmem>>, %arg2: memref<2x8x32xf32, #tpu.memory_space<vmem>>, %arg3: memref<2x8x32xf32, #tpu.memory_space<vmem>>, %arg4: memref<2x8x8xf32, #tpu.memory_space<vmem>>, %arg5: memref<32x32xf32, #tpu.memory_space<vmem>>, %arg6: memref<32x32xf32, #tpu.memory_space<vmem>>, %arg7: memref<1x32xf32, #tpu.memory_space<vmem>>, %arg8: memref<1x32xf32, #tpu.memory_space<vmem>>, %arg9: memref<32x64xf32, #tpu.memory_space<vmem>>, %arg10: memref<1x64xf32, #tpu.memory_space<vmem>>, %arg11: memref<64x32xf32, #tpu.memory_space<vmem>>, %arg12: memref<1x32xf32, #tpu.memory_space<vmem>>, %arg13: memref<1x32xf32, #tpu.memory_space<vmem>>, %arg14: memref<1x32xf32, #tpu.memory_space<vmem>>, %arg15: memref<2x8x32xf32, #tpu.memory_space<vmem>>) attributes {dimension_semantics = [#tpu.dimension_semantics<parallel>], iteration_bounds = array<i64: 1>, scalar_prefetch = 0 : i64, scratch_operands = 0 : i64, tpu.core_type = #tpu.core_type<tc>, window_params = [{transform_indices = @transform_0, window_bounds = array<i64: 2, 8, 32>}, {transform_indices = @transform_1, window_bounds = array<i64: 2, 8, 32>}, {transform_indices = @transform_2, window_bounds = array<i64: 2, 8, 32>}, {transform_indices = @transform_3, window_bounds = array<i64: 2, 8, 8>}, {pipeline_mode = #tpu.pipeline_mode<synchronous>, transform_indices = @transform_4, window_bounds = array<i64: 32, 32>}, {pipeline_mode = #tpu.pipeline_mode<synchronous>, transform_indices = @transform_5, window_bounds = array<i64: 32, 32>}, {pipeline_mode = #tpu.pipeline_mode<synchronous>, transform_indices = @transform_6, window_bounds = array<i64: 1, 32>}, {pipeline_mode = #tpu.pipeline_mode<synchronous>, transform_indices = @transform_7, window_bounds = array<i64: 1, 32>}, {pipeline_mode = #tpu.pipeline_mode<synchronous>, transform_indices = @transform_8, window_bounds = array<i64: 32, 64>}, {pipeline_mode = #tpu.pipeline_mode<synchronous>, transform_indices = @transform_9, window_bounds = array<i64: 1, 64>}, {pipeline_mode = #tpu.pipeline_mode<synchronous>, transform_indices = @transform_10, window_bounds = array<i64: 64, 32>}, {pipeline_mode = #tpu.pipeline_mode<synchronous>, transform_indices = @transform_11, window_bounds = array<i64: 1, 32>}, {pipeline_mode = #tpu.pipeline_mode<synchronous>, transform_indices = @transform_12, window_bounds = array<i64: 1, 32>}, {pipeline_mode = #tpu.pipeline_mode<synchronous>, transform_indices = @transform_13, window_bounds = array<i64: 1, 32>}, {transform_indices = @transform_14, window_bounds = array<i64: 2, 8, 32>}]} {
    %c0 = arith.constant 0 : index
    %c0_0 = arith.constant 0 : index
    %c0_1 = arith.constant 0 : index
    %0 = vector.load %arg1[%c0, %c0_0, %c0_1] : memref<2x8x32xf32, #tpu.memory_space<vmem>>, vector<2x8x32xf32>
    %c0_2 = arith.constant 0 : index
    %c0_3 = arith.constant 0 : index
    %c0_4 = arith.constant 0 : index
    %1 = vector.load %arg2[%c0_2, %c0_3, %c0_4] : memref<2x8x32xf32, #tpu.memory_space<vmem>>, vector<2x8x32xf32>
    %c0_5 = arith.constant 0 : index
    %c0_6 = arith.constant 0 : index
    %c0_7 = arith.constant 0 : index
    %2 = vector.load %arg3[%c0_5, %c0_6, %c0_7] : memref<2x8x32xf32, #tpu.memory_space<vmem>>, vector<2x8x32xf32>
    %c0_8 = arith.constant 0 : index
    %c0_9 = arith.constant 0 : index
    %c0_10 = arith.constant 0 : index
    %3 = vector.load %arg4[%c0_8, %c0_9, %c0_10] : memref<2x8x8xf32, #tpu.memory_space<vmem>>, vector<2x8x8xf32>
    %4 = vector.shape_cast %0 : vector<2x8x32xf32> to vector<16x32xf32>
    %c0_11 = arith.constant 0 : index
    %c0_12 = arith.constant 0 : index
    %5 = vector.load %arg5[%c0_11, %c0_12] : memref<32x32xf32, #tpu.memory_space<vmem>>, vector<32x32xf32>
    %cst = arith.constant dense<0.000000e+00> : vector<16x32xf32>
    %6 = tpu.matmul %4, %5, %cst {dimension_numbers = #tpu.dot_dimension_numbers<[1], [0], [0], [1], [0, 0, 1, 1], [], []>} : vector<16x32xf32>, vector<32x32xf32>, vector<16x32xf32> -> vector<16x32xf32>
    %7 = vector.shape_cast %6 : vector<16x32xf32> to vector<2x8x32xf32>
    %c0_13 = arith.constant 0 : index
    %c0_14 = arith.constant 0 : index
    %8 = vector.load %arg6[%c0_13, %c0_14] : memref<32x32xf32, #tpu.memory_space<vmem>>, vector<32x32xf32>
    %cst_15 = arith.constant 0.000000e+00 : f32
    %9 = vector.broadcast %cst_15 : f32 to vector<16x32xf32>
    %10 = vector.extract_strided_slice %7 {offsets = [0, 0, 0], sizes = [2, 8, 8], strides = [1, 1, 1]} : vector<2x8x32xf32> to vector<2x8x8xf32>
    %11 = vector.extract_strided_slice %1 {offsets = [0, 0, 0], sizes = [2, 8, 8], strides = [1, 1, 1]} : vector<2x8x32xf32> to vector<2x8x8xf32>
    %12 = vector.extract_strided_slice %2 {offsets = [0, 0, 0], sizes = [2, 8, 8], strides = [1, 1, 1]} : vector<2x8x32xf32> to vector<2x8x8xf32>
    "tpu.trace_start"() <{level = 10 : i32, message = "bqd,bkd->bqk"}> : () -> ()
    %cst_16 = arith.constant dense<0.000000e+00> : vector<2x8x8xf32>
    %13 = tpu.matmul %10, %11, %cst_16 {dimension_numbers = #tpu.dot_dimension_numbers<[2], [2], [1], [1], [0, 0, 0, 1, 1, 1], [0], [0]>} : vector<2x8x8xf32>, vector<2x8x8xf32>, vector<2x8x8xf32> -> vector<2x8x8xf32>
    "tpu.trace_stop"() : () -> ()
    %cst_17 = arith.constant 0.353553385 : f32
    %14 = vector.broadcast %cst_17 : f32 to vector<2x8x8xf32>
    %15 = arith.mulf %13, %14 : vector<2x8x8xf32>
    %16 = arith.addf %15, %3 : vector<2x8x8xf32>
    %cst_18 = arith.constant dense<0xFF800000> : vector<2x8xf32>
    %17 = vector.multi_reduction <maximumf>, %16, %cst_18 [2] : vector<2x8x8xf32> to vector<2x8xf32>
    %18 = vector.shape_cast %17 : vector<2x8xf32> to vector<2x8x1xf32>
    %19 = vector.broadcast %18 : vector<2x8x1xf32> to vector<2x8x8xf32>
    %20 = arith.subf %16, %19 : vector<2x8x8xf32>
    %21 = math.exp %20 : vector<2x8x8xf32>
    %cst_19 = arith.constant dense<0.000000e+00> : vector<2x8xf32>
    %22 = vector.multi_reduction <add>, %21, %cst_19 [2] : vector<2x8x8xf32> to vector<2x8xf32>
    %23 = vector.shape_cast %22 : vector<2x8xf32> to vector<2x8x1xf32>
    %24 = tpu.reciprocal %23 {approx = true} : vector<2x8x1xf32> -> vector<2x8x1xf32>
    %25 = vector.broadcast %24 : vector<2x8x1xf32> to vector<2x8x8xf32>
    %26 = arith.mulf %21, %25 : vector<2x8x8xf32>
    "tpu.trace_start"() <{level = 10 : i32, message = "bqk,bkd->bqd"}> : () -> ()
    %cst_20 = arith.constant dense<0.000000e+00> : vector<2x8x8xf32>
    %27 = tpu.matmul %26, %12, %cst_20 {dimension_numbers = #tpu.dot_dimension_numbers<[2], [1], [1], [2], [0, 0, 0, 1, 1, 2], [0], [0]>} : vector<2x8x8xf32>, vector<2x8x8xf32>, vector<2x8x8xf32> -> vector<2x8x8xf32>
    "tpu.trace_stop"() : () -> ()
    %28 = vector.shape_cast %27 : vector<2x8x8xf32> to vector<16x8xf32>
    %29 = vector.extract_strided_slice %8 {offsets = [0, 0], sizes = [8, 32], strides = [1, 1]} : vector<32x32xf32> to vector<8x32xf32>
    %cst_21 = arith.constant dense<0.000000e+00> : vector<16x32xf32>
    %30 = tpu.matmul %28, %29, %cst_21 {dimension_numbers = #tpu.dot_dimension_numbers<[1], [0], [0], [1], [0, 0, 1, 1], [], []>} : vector<16x8xf32>, vector<8x32xf32>, vector<16x32xf32> -> vector<16x32xf32>
    %31 = arith.addf %9, %30 : vector<16x32xf32>
    %32 = vector.extract_strided_slice %7 {offsets = [0, 0, 8], sizes = [2, 8, 8], strides = [1, 1, 1]} : vector<2x8x32xf32> to vector<2x8x8xf32>
    %33 = vector.extract_strided_slice %1 {offsets = [0, 0, 8], sizes = [2, 8, 8], strides = [1, 1, 1]} : vector<2x8x32xf32> to vector<2x8x8xf32>
    %34 = vector.extract_strided_slice %2 {offsets = [0, 0, 8], sizes = [2, 8, 8], strides = [1, 1, 1]} : vector<2x8x32xf32> to vector<2x8x8xf32>
    "tpu.trace_start"() <{level = 10 : i32, message = "bqd,bkd->bqk"}> : () -> ()
    %cst_22 = arith.constant dense<0.000000e+00> : vector<2x8x8xf32>
    %35 = tpu.matmul %32, %33, %cst_22 {dimension_numbers = #tpu.dot_dimension_numbers<[2], [2], [1], [1], [0, 0, 0, 1, 1, 1], [0], [0]>} : vector<2x8x8xf32>, vector<2x8x8xf32>, vector<2x8x8xf32> -> vector<2x8x8xf32>
    "tpu.trace_stop"() : () -> ()
    %cst_23 = arith.constant 0.353553385 : f32
    %36 = vector.broadcast %cst_23 : f32 to vector<2x8x8xf32>
    %37 = arith.mulf %35, %36 : vector<2x8x8xf32>
    %38 = arith.addf %37, %3 : vector<2x8x8xf32>
    %cst_24 = arith.constant dense<0xFF800000> : vector<2x8xf32>
    %39 = vector.multi_reduction <maximumf>, %38, %cst_24 [2] : vector<2x8x8xf32> to vector<2x8xf32>
    %40 = vector.shape_cast %39 : vector<2x8xf32> to vector<2x8x1xf32>
    %41 = vector.broadcast %40 : vector<2x8x1xf32> to vector<2x8x8xf32>
    %42 = arith.subf %38, %41 : vector<2x8x8xf32>
    %43 = math.exp %42 : vector<2x8x8xf32>
    %cst_25 = arith.constant dense<0.000000e+00> : vector<2x8xf32>
    %44 = vector.multi_reduction <add>, %43, %cst_25 [2] : vector<2x8x8xf32> to vector<2x8xf32>
    %45 = vector.shape_cast %44 : vector<2x8xf32> to vector<2x8x1xf32>
    %46 = tpu.reciprocal %45 {approx = true} : vector<2x8x1xf32> -> vector<2x8x1xf32>
    %47 = vector.broadcast %46 : vector<2x8x1xf32> to vector<2x8x8xf32>
    %48 = arith.mulf %43, %47 : vector<2x8x8xf32>
    "tpu.trace_start"() <{level = 10 : i32, message = "bqk,bkd->bqd"}> : () -> ()
    %cst_26 = arith.constant dense<0.000000e+00> : vector<2x8x8xf32>
    %49 = tpu.matmul %48, %34, %cst_26 {dimension_numbers = #tpu.dot_dimension_numbers<[2], [1], [1], [2], [0, 0, 0, 1, 1, 2], [0], [0]>} : vector<2x8x8xf32>, vector<2x8x8xf32>, vector<2x8x8xf32> -> vector<2x8x8xf32>
    "tpu.trace_stop"() : () -> ()
    %50 = vector.shape_cast %49 : vector<2x8x8xf32> to vector<16x8xf32>
    %51 = vector.extract_strided_slice %8 {offsets = [8, 0], sizes = [8, 32], strides = [1, 1]} : vector<32x32xf32> to vector<8x32xf32>
    %cst_27 = arith.constant dense<0.000000e+00> : vector<16x32xf32>
    %52 = tpu.matmul %50, %51, %cst_27 {dimension_numbers = #tpu.dot_dimension_numbers<[1], [0], [0], [1], [0, 0, 1, 1], [], []>} : vector<16x8xf32>, vector<8x32xf32>, vector<16x32xf32> -> vector<16x32xf32>
    %53 = arith.addf %31, %52 : vector<16x32xf32>
    %54 = vector.extract_strided_slice %7 {offsets = [0, 0, 16], sizes = [2, 8, 8], strides = [1, 1, 1]} : vector<2x8x32xf32> to vector<2x8x8xf32>
    %55 = vector.extract_strided_slice %1 {offsets = [0, 0, 16], sizes = [2, 8, 8], strides = [1, 1, 1]} : vector<2x8x32xf32> to vector<2x8x8xf32>
    %56 = vector.extract_strided_slice %2 {offsets = [0, 0, 16], sizes = [2, 8, 8], strides = [1, 1, 1]} : vector<2x8x32xf32> to vector<2x8x8xf32>
    "tpu.trace_start"() <{level = 10 : i32, message = "bqd,bkd->bqk"}> : () -> ()
    %cst_28 = arith.constant dense<0.000000e+00> : vector<2x8x8xf32>
    %57 = tpu.matmul %54, %55, %cst_28 {dimension_numbers = #tpu.dot_dimension_numbers<[2], [2], [1], [1], [0, 0, 0, 1, 1, 1], [0], [0]>} : vector<2x8x8xf32>, vector<2x8x8xf32>, vector<2x8x8xf32> -> vector<2x8x8xf32>
    "tpu.trace_stop"() : () -> ()
    %cst_29 = arith.constant 0.353553385 : f32
    %58 = vector.broadcast %cst_29 : f32 to vector<2x8x8xf32>
    %59 = arith.mulf %57, %58 : vector<2x8x8xf32>
    %60 = arith.addf %59, %3 : vector<2x8x8xf32>
    %cst_30 = arith.constant dense<0xFF800000> : vector<2x8xf32>
    %61 = vector.multi_reduction <maximumf>, %60, %cst_30 [2] : vector<2x8x8xf32> to vector<2x8xf32>
    %62 = vector.shape_cast %61 : vector<2x8xf32> to vector<2x8x1xf32>
    %63 = vector.broadcast %62 : vector<2x8x1xf32> to vector<2x8x8xf32>
    %64 = arith.subf %60, %63 : vector<2x8x8xf32>
    %65 = math.exp %64 : vector<2x8x8xf32>
    %cst_31 = arith.constant dense<0.000000e+00> : vector<2x8xf32>
    %66 = vector.multi_reduction <add>, %65, %cst_31 [2] : vector<2x8x8xf32> to vector<2x8xf32>
    %67 = vector.shape_cast %66 : vector<2x8xf32> to vector<2x8x1xf32>
    %68 = tpu.reciprocal %67 {approx = true} : vector<2x8x1xf32> -> vector<2x8x1xf32>
    %69 = vector.broadcast %68 : vector<2x8x1xf32> to vector<2x8x8xf32>
    %70 = arith.mulf %65, %69 : vector<2x8x8xf32>
    "tpu.trace_start"() <{level = 10 : i32, message = "bqk,bkd->bqd"}> : () -> ()
    %cst_32 = arith.constant dense<0.000000e+00> : vector<2x8x8xf32>
    %71 = tpu.matmul %70, %56, %cst_32 {dimension_numbers = #tpu.dot_dimension_numbers<[2], [1], [1], [2], [0, 0, 0, 1, 1, 2], [0], [0]>} : vector<2x8x8xf32>, vector<2x8x8xf32>, vector<2x8x8xf32> -> vector<2x8x8xf32>
    "tpu.trace_stop"() : () -> ()
    %72 = vector.shape_cast %71 : vector<2x8x8xf32> to vector<16x8xf32>
    %73 = vector.extract_strided_slice %8 {offsets = [16, 0], sizes = [8, 32], strides = [1, 1]} : vector<32x32xf32> to vector<8x32xf32>
    %cst_33 = arith.constant dense<0.000000e+00> : vector<16x32xf32>
    %74 = tpu.matmul %72, %73, %cst_33 {dimension_numbers = #tpu.dot_dimension_numbers<[1], [0], [0], [1], [0, 0, 1, 1], [], []>} : vector<16x8xf32>, vector<8x32xf32>, vector<16x32xf32> -> vector<16x32xf32>
    %75 = arith.addf %53, %74 : vector<16x32xf32>
    %76 = vector.extract_strided_slice %7 {offsets = [0, 0, 24], sizes = [2, 8, 8], strides = [1, 1, 1]} : vector<2x8x32xf32> to vector<2x8x8xf32>
    %77 = vector.extract_strided_slice %1 {offsets = [0, 0, 24], sizes = [2, 8, 8], strides = [1, 1, 1]} : vector<2x8x32xf32> to vector<2x8x8xf32>
    %78 = vector.extract_strided_slice %2 {offsets = [0, 0, 24], sizes = [2, 8, 8], strides = [1, 1, 1]} : vector<2x8x32xf32> to vector<2x8x8xf32>
    "tpu.trace_start"() <{level = 10 : i32, message = "bqd,bkd->bqk"}> : () -> ()
    %cst_34 = arith.constant dense<0.000000e+00> : vector<2x8x8xf32>
    %79 = tpu.matmul %76, %77, %cst_34 {dimension_numbers = #tpu.dot_dimension_numbers<[2], [2], [1], [1], [0, 0, 0, 1, 1, 1], [0], [0]>} : vector<2x8x8xf32>, vector<2x8x8xf32>, vector<2x8x8xf32> -> vector<2x8x8xf32>
    "tpu.trace_stop"() : () -> ()
    %cst_35 = arith.constant 0.353553385 : f32
    %80 = vector.broadcast %cst_35 : f32 to vector<2x8x8xf32>
    %81 = arith.mulf %79, %80 : vector<2x8x8xf32>
    %82 = arith.addf %81, %3 : vector<2x8x8xf32>
    %cst_36 = arith.constant dense<0xFF800000> : vector<2x8xf32>
    %83 = vector.multi_reduction <maximumf>, %82, %cst_36 [2] : vector<2x8x8xf32> to vector<2x8xf32>
    %84 = vector.shape_cast %83 : vector<2x8xf32> to vector<2x8x1xf32>
    %85 = vector.broadcast %84 : vector<2x8x1xf32> to vector<2x8x8xf32>
    %86 = arith.subf %82, %85 : vector<2x8x8xf32>
    %87 = math.exp %86 : vector<2x8x8xf32>
    %cst_37 = arith.constant dense<0.000000e+00> : vector<2x8xf32>
    %88 = vector.multi_reduction <add>, %87, %cst_37 [2] : vector<2x8x8xf32> to vector<2x8xf32>
    %89 = vector.shape_cast %88 : vector<2x8xf32> to vector<2x8x1xf32>
    %90 = tpu.reciprocal %89 {approx = true} : vector<2x8x1xf32> -> vector<2x8x1xf32>
    %91 = vector.broadcast %90 : vector<2x8x1xf32> to vector<2x8x8xf32>
    %92 = arith.mulf %87, %91 : vector<2x8x8xf32>
    "tpu.trace_start"() <{level = 10 : i32, message = "bqk,bkd->bqd"}> : () -> ()
    %cst_38 = arith.constant dense<0.000000e+00> : vector<2x8x8xf32>
    %93 = tpu.matmul %92, %78, %cst_38 {dimension_numbers = #tpu.dot_dimension_numbers<[2], [1], [1], [2], [0, 0, 0, 1, 1, 2], [0], [0]>} : vector<2x8x8xf32>, vector<2x8x8xf32>, vector<2x8x8xf32> -> vector<2x8x8xf32>
    "tpu.trace_stop"() : () -> ()
    %94 = vector.shape_cast %93 : vector<2x8x8xf32> to vector<16x8xf32>
    %95 = vector.extract_strided_slice %8 {offsets = [24, 0], sizes = [8, 32], strides = [1, 1]} : vector<32x32xf32> to vector<8x32xf32>
    %cst_39 = arith.constant dense<0.000000e+00> : vector<16x32xf32>
    %96 = tpu.matmul %94, %95, %cst_39 {dimension_numbers = #tpu.dot_dimension_numbers<[1], [0], [0], [1], [0, 0, 1, 1], [], []>} : vector<16x8xf32>, vector<8x32xf32>, vector<16x32xf32> -> vector<16x32xf32>
    %97 = arith.addf %75, %96 : vector<16x32xf32>
    %98 = arith.addf %4, %97 : vector<16x32xf32>
    %c0_40 = arith.constant 0 : index
    %c0_41 = arith.constant 0 : index
    %99 = vector.load %arg7[%c0_40, %c0_41] : memref<1x32xf32, #tpu.memory_space<vmem>>, vector<1x32xf32>
    %c0_42 = arith.constant 0 : index
    %c0_43 = arith.constant 0 : index
    %100 = vector.load %arg8[%c0_42, %c0_43] : memref<1x32xf32, #tpu.memory_space<vmem>>, vector<1x32xf32>
    %cst_44 = arith.constant dense<0.000000e+00> : vector<16xf32>
    %101 = vector.multi_reduction <add>, %98, %cst_44 [1] : vector<16x32xf32> to vector<16xf32>
    %102 = vector.shape_cast %101 : vector<16xf32> to vector<16x1xf32>
    %cst_45 = arith.constant 3.200000e+01 : f32
    %103 = vector.broadcast %cst_45 : f32 to vector<16x1xf32>
    %104 = arith.divf %102, %103 : vector<16x1xf32>
    %105 = vector.broadcast %104 : vector<16x1xf32> to vector<16x32xf32>
    %106 = arith.subf %98, %105 : vector<16x32xf32>
    %107 = arith.mulf %106, %106 : vector<16x32xf32>
    %cst_46 = arith.constant dense<0.000000e+00> : vector<16xf32>
    %108 = vector.multi_reduction <add>, %107, %cst_46 [1] : vector<16x32xf32> to vector<16xf32>
    %109 = vector.shape_cast %108 : vector<16xf32> to vector<16x1xf32>
    %cst_47 = arith.constant 0.0322580636 : f32
    %110 = vector.broadcast %cst_47 : f32 to vector<16x1xf32>
    %111 = arith.mulf %109, %110 : vector<16x1xf32>
    %112 = math.sqrt %111 : vector<16x1xf32>
    %cst_48 = arith.constant 9.99999997E-7 : f32
    %113 = vector.broadcast %cst_48 : f32 to vector<16x1xf32>
    %114 = arith.addf %112, %113 : vector<16x1xf32>
    %115 = tpu.reciprocal %114 {approx = true} : vector<16x1xf32> -> vector<16x1xf32>
    %116 = vector.broadcast %99 : vector<1x32xf32> to vector<16x32xf32>
    %117 = arith.mulf %116, %106 : vector<16x32xf32>
    %118 = vector.broadcast %115 : vector<16x1xf32> to vector<16x32xf32>
    %119 = arith.mulf %117, %118 : vector<16x32xf32>
    %120 = vector.broadcast %100 : vector<1x32xf32> to vector<16x32xf32>
    %121 = arith.addf %119, %120 : vector<16x32xf32>
    %c0_49 = arith.constant 0 : index
    %c0_50 = arith.constant 0 : index
    %122 = vector.load %arg9[%c0_49, %c0_50] : memref<32x64xf32, #tpu.memory_space<vmem>>, vector<32x64xf32>
    %cst_51 = arith.constant dense<0.000000e+00> : vector<16x64xf32>
    %123 = tpu.matmul %121, %122, %cst_51 {dimension_numbers = #tpu.dot_dimension_numbers<[1], [0], [0], [1], [0, 0, 1, 1], [], []>} : vector<16x32xf32>, vector<32x64xf32>, vector<16x64xf32> -> vector<16x64xf32>
    %c0_52 = arith.constant 0 : index
    %c0_53 = arith.constant 0 : index
    %124 = vector.load %arg10[%c0_52, %c0_53] : memref<1x64xf32, #tpu.memory_space<vmem>>, vector<1x64xf32>
    %125 = vector.broadcast %124 : vector<1x64xf32> to vector<16x64xf32>
    %126 = arith.addf %123, %125 : vector<16x64xf32>
    %cst_54 = arith.constant 0.000000e+00 : f32
    %127 = vector.broadcast %cst_54 : f32 to vector<16x64xf32>
    %128 = arith.maximumf %126, %127 : vector<16x64xf32>
    %c0_55 = arith.constant 0 : index
    %c0_56 = arith.constant 0 : index
    %129 = vector.load %arg11[%c0_55, %c0_56] : memref<64x32xf32, #tpu.memory_space<vmem>>, vector<64x32xf32>
    %cst_57 = arith.constant dense<0.000000e+00> : vector<16x32xf32>
    %130 = tpu.matmul %128, %129, %cst_57 {dimension_numbers = #tpu.dot_dimension_numbers<[1], [0], [0], [1], [0, 0, 1, 1], [], []>} : vector<16x64xf32>, vector<64x32xf32>, vector<16x32xf32> -> vector<16x32xf32>
    %c0_58 = arith.constant 0 : index
    %c0_59 = arith.constant 0 : index
    %131 = vector.load %arg12[%c0_58, %c0_59] : memref<1x32xf32, #tpu.memory_space<vmem>>, vector<1x32xf32>
    %132 = vector.broadcast %131 : vector<1x32xf32> to vector<16x32xf32>
    %133 = arith.addf %130, %132 : vector<16x32xf32>
    %134 = arith.addf %133, %121 : vector<16x32xf32>
    %c0_60 = arith.constant 0 : index
    %c0_61 = arith.constant 0 : index
    %135 = vector.load %arg13[%c0_60, %c0_61] : memref<1x32xf32, #tpu.memory_space<vmem>>, vector<1x32xf32>
    %c0_62 = arith.constant 0 : index
    %c0_63 = arith.constant 0 : index
    %136 = vector.load %arg14[%c0_62, %c0_63] : memref<1x32xf32, #tpu.memory_space<vmem>>, vector<1x32xf32>
    %cst_64 = arith.constant dense<0.000000e+00> : vector<16xf32>
    %137 = vector.multi_reduction <add>, %134, %cst_64 [1] : vector<16x32xf32> to vector<16xf32>
    %138 = vector.shape_cast %137 : vector<16xf32> to vector<16x1xf32>
    %cst_65 = arith.constant 3.200000e+01 : f32
    %139 = vector.broadcast %cst_65 : f32 to vector<16x1xf32>
    %140 = arith.divf %138, %139 : vector<16x1xf32>
    %141 = vector.broadcast %140 : vector<16x1xf32> to vector<16x32xf32>
    %142 = arith.subf %134, %141 : vector<16x32xf32>
    %143 = arith.mulf %142, %142 : vector<16x32xf32>
    %cst_66 = arith.constant dense<0.000000e+00> : vector<16xf32>
    %144 = vector.multi_reduction <add>, %143, %cst_66 [1] : vector<16x32xf32> to vector<16xf32>
    %145 = vector.shape_cast %144 : vector<16xf32> to vector<16x1xf32>
    %cst_67 = arith.constant 0.0322580636 : f32
    %146 = vector.broadcast %cst_67 : f32 to vector<16x1xf32>
    %147 = arith.mulf %145, %146 : vector<16x1xf32>
    %148 = math.sqrt %147 : vector<16x1xf32>
    %cst_68 = arith.constant 9.99999997E-7 : f32
    %149 = vector.broadcast %cst_68 : f32 to vector<16x1xf32>
    %150 = arith.addf %148, %149 : vector<16x1xf32>
    %151 = tpu.reciprocal %150 {approx = true} : vector<16x1xf32> -> vector<16x1xf32>
    %152 = vector.broadcast %135 : vector<1x32xf32> to vector<16x32xf32>
    %153 = arith.mulf %152, %142 : vector<16x32xf32>
    %154 = vector.broadcast %151 : vector<16x1xf32> to vector<16x32xf32>
    %155 = arith.mulf %153, %154 : vector<16x32xf32>
    %156 = vector.broadcast %136 : vector<1x32xf32> to vector<16x32xf32>
    %157 = arith.addf %155, %156 : vector<16x32xf32>
    %158 = vector.shape_cast %157 : vector<16x32xf32> to vector<2x8x32xf32>
    %c0_69 = arith.constant 0 : index
    %c0_70 = arith.constant 0 : index
    %c0_71 = arith.constant 0 : index
    %159 = vector.load %arg15[%c0_69, %c0_70, %c0_71] : memref<2x8x32xf32, #tpu.memory_space<vmem>>, vector<2x8x32xf32>
    tpu.vector_store %arg15[%c0_69, %c0_70, %c0_71], %158 {strides = array<i32>} : memref<2x8x32xf32, #tpu.memory_space<vmem>>, vector<2x8x32xf32>,
    return
  }
  func.func @transform_0(%arg0: i32) -> (i32, i32, i32) {
    %c0_i32 = arith.constant 0 : i32
    %c0_i32_0 = arith.constant 0 : i32
    %c0_i32_1 = arith.constant 0 : i32
    return %arg0, %c0_i32, %c0_i32_0 : i32, i32, i32
  }
  func.func @transform_1(%arg0: i32) -> (i32, i32, i32) {
    %c0_i32 = arith.constant 0 : i32
    %c0_i32_0 = arith.constant 0 : i32
    %c0_i32_1 = arith.constant 0 : i32
    return %arg0, %c0_i32, %c0_i32_0 : i32, i32, i32
  }
  func.func @transform_2(%arg0: i32) -> (i32, i32, i32) {
    %c0_i32 = arith.constant 0 : i32
    %c0_i32_0 = arith.constant 0 : i32
    %c0_i32_1 = arith.constant 0 : i32
    return %arg0, %c0_i32, %c0_i32_0 : i32, i32, i32
  }
  func.func @transform_3(%arg0: i32) -> (i32, i32, i32) {
    %c0_i32 = arith.constant 0 : i32
    %c0_i32_0 = arith.constant 0 : i32
    %c0_i32_1 = arith.constant 0 : i32
    return %arg0, %c0_i32, %c0_i32_0 : i32, i32, i32
  }
  func.func @transform_4(%arg0: i32) -> (i32, i32) {
    %c0_i32 = arith.constant 0 : i32
    %c0_i32_0 = arith.constant 0 : i32
    %c0_i32_1 = arith.constant 0 : i32
    return %c0_i32, %c0_i32_0 : i32, i32
  }
  func.func @transform_5(%arg0: i32) -> (i32, i32) {
    %c0_i32 = arith.constant 0 : i32
    %c0_i32_0 = arith.constant 0 : i32
    %c0_i32_1 = arith.constant 0 : i32
    return %c0_i32, %c0_i32_0 : i32, i32
  }
  func.func @transform_6(%arg0: i32) -> (i32, i32) {
    %c0_i32 = arith.constant 0 : i32
    %c0_i32_0 = arith.constant 0 : i32
    %c0_i32_1 = arith.constant 0 : i32
    return %c0_i32, %c0_i32_0 : i32, i32
  }
  func.func @transform_7(%arg0: i32) -> (i32, i32) {
    %c0_i32 = arith.constant 0 : i32
    %c0_i32_0 = arith.constant 0 : i32
    %c0_i32_1 = arith.constant 0 : i32
    return %c0_i32, %c0_i32_0 : i32, i32
  }
  func.func @transform_8(%arg0: i32) -> (i32, i32) {
    %c0_i32 = arith.constant 0 : i32
    %c0_i32_0 = arith.constant 0 : i32
    %c0_i32_1 = arith.constant 0 : i32
    return %c0_i32, %c0_i32_0 : i32, i32
  }
  func.func @transform_9(%arg0: i32) -> (i32, i32) {
    %c0_i32 = arith.constant 0 : i32
    %c0_i32_0 = arith.constant 0 : i32
    %c0_i32_1 = arith.constant 0 : i32
    return %c0_i32, %c0_i32_0 : i32, i32
  }
  func.func @transform_10(%arg0: i32) -> (i32, i32) {
    %c0_i32 = arith.constant 0 : i32
    %c0_i32_0 = arith.constant 0 : i32
    %c0_i32_1 = arith.constant 0 : i32
    return %c0_i32, %c0_i32_0 : i32, i32
  }
  func.func @transform_11(%arg0: i32) -> (i32, i32) {
    %c0_i32 = arith.constant 0 : i32
    %c0_i32_0 = arith.constant 0 : i32
    %c0_i32_1 = arith.constant 0 : i32
    return %c0_i32, %c0_i32_0 : i32, i32
  }
  func.func @transform_12(%arg0: i32) -> (i32, i32) {
    %c0_i32 = arith.constant 0 : i32
    %c0_i32_0 = arith.constant 0 : i32
    %c0_i32_1 = arith.constant 0 : i32
    return %c0_i32, %c0_i32_0 : i32, i32
  }
  func.func @transform_13(%arg0: i32) -> (i32, i32) {
    %c0_i32 = arith.constant 0 : i32
    %c0_i32_0 = arith.constant 0 : i32
    %c0_i32_1 = arith.constant 0 : i32
    return %c0_i32, %c0_i32_0 : i32, i32
  }
  func.func @transform_14(%arg0: i32) -> (i32, i32, i32) {
    %c0_i32 = arith.constant 0 : i32
    %c0_i32_0 = arith.constant 0 : i32
    %c0_i32_1 = arith.constant 0 : i32
    return %arg0, %c0_i32, %c0_i32_0 : i32, i32, i32
  }
}

</mosaic_0001>

<llo_original>
// kernel: tpu_custom_call.1
$region0: #{tpu_custom_call.1}
  #allocation0 [shape = 'u32[]', space=smem, size = 0x4, offset = 0x4, fixed_abs, tag = 'smem constant byte address 0x4 - core index']
  #allocation1 [shape = 'u32[72,128]{1,0:T(1,128)}', space=vmem, size = 0x9000, scoped, tag = 'internal scratch']
  %s0 = inlined_call_operand.hbm [shape: f32[2,8,32], index: 0, kind: input, shape index: {}]
  %s1 = inlined_call_operand.hbm [shape: f32[2,8,32], index: 1, kind: input, shape index: {}]
  %s2 = inlined_call_operand.hbm [shape: f32[2,8,32], index: 2, kind: input, shape index: {}]
  %s3 = inlined_call_operand.hbm [shape: f32[2,8,8], index: 3, kind: input, shape index: {}]
  %s4 = inlined_call_operand.vmem [shape: f32[32,32], index: 4, kind: input, shape index: {}]
  %s5 = inlined_call_operand.vmem [shape: f32[32,32], index: 5, kind: input, shape index: {}]
  %s6 = inlined_call_operand.vmem [shape: f32[1,32], index: 6, kind: input, shape index: {}]
  %s7 = inlined_call_operand.vmem [shape: f32[1,32], index: 7, kind: input, shape index: {}]
  %s8 = inlined_call_operand.vmem [shape: f32[32,64], index: 8, kind: input, shape index: {}]
  %s9 = inlined_call_operand.vmem [shape: f32[1,64], index: 9, kind: input, shape index: {}]
  %s10 = inlined_call_operand.vmem [shape: f32[64,32], index: 10, kind: input, shape index: {}]
  %s11 = inlined_call_operand.vmem [shape: f32[1,32], index: 11, kind: input, shape index: {}]
  %s12 = inlined_call_operand.vmem [shape: f32[1,32], index: 12, kind: input, shape index: {}]
  %s13 = inlined_call_operand.vmem [shape: f32[1,32], index: 13, kind: input, shape index: {}]
  %s14 = inlined_call_operand.hbm [shape: f32[2,8,32], index: 14, kind: output, shape index: {}]
  %s15 = sld [smem:[#allocation0]]
  $region82: #{tpu_custom_call.1} parent=0
    _
  %s17 = ssub.s32 1, %s15
  %s18 = scalar_select 0, %s17, %s15
  $region1: #{tpu_custom_call.1} parent=0
    #allocation2 [shape = 'u8[8192]{0}', space=vmem, size = 0x2000, scoped, tag = 'input window, operand 0, single buffered']
    #allocation3 [shape = 's32[1]{0}', space=sflag, size = 0x4, scoped, tag = 'scoped memory for tpu_custom_call.1']
    #allocation4 [shape = 's32[1]{0}', space=sflag, size = 0x4, scoped, tag = 'scoped memory for tpu_custom_call.1']
    #allocation5 [shape = 'u8[8192]{0}', space=vmem, size = 0x2000, scoped, tag = 'input window, operand 1, single buffered']
    #allocation6 [shape = 's32[1]{0}', space=sflag, size = 0x4, scoped, tag = 'scoped memory for tpu_custom_call.1']
    #allocation7 [shape = 'u8[8192]{0}', space=vmem, size = 0x2000, scoped, tag = 'input window, operand 2, single buffered']
    #allocation8 [shape = 'u8[8192]{0}', space=vmem, size = 0x2000, scoped, tag = 'input window, operand 3, single buffered']
    #allocation9 [shape = 's32[1]{0}', space=sflag, size = 0x4, scoped, tag = 'scoped memory for tpu_custom_call.1']
    #allocation10 [shape = 'u8[8192]{0}', space=vmem, size = 0x2000, scoped, tag = 'output window, operand 0, single buffered']
    %19 = vsyncpa [#allocation3], 0
    %20 = vsyncpa [#allocation6], 0
    %21 = vsyncpa [#allocation9], 0
    %22 = vsyncpa [#allocation4], 0
    // Predicated region
    $region2: #{tpu_custom_call.1} parent=1 // pred_check
      _
    $region3: #{tpu_custom_call.1} parent=1 // pred_check_branch
      %24 = sbr.rel (0) target = $region5
    $region4: #{tpu_custom_call.1} parent=1 // pred_region
      %26 = vsyncadd [#allocation3], 0
      %s27 = sshll.u32 %s0, 4
      %s28 = int_to_ptr.hbm [resolvable:$true] %s27
      %s29 = sshll.u32 [#allocation2], 4
      %s30 = int_to_ptr.vmem [resolvable:$true] %s29
      %35 = dma.hbm_to_vmem [thread:$0]  %s28, 256, %s30, [#allocation3], 128, 128, 8
    $region5: #{tpu_custom_call.1} parent=1 // pred_fallthru
      _
    // Predicated region
    $region6: #{tpu_custom_call.1} parent=1 // pred_check
      _
    $region7: #{tpu_custom_call.1} parent=1 // pred_check_branch
      %37 = sbr.rel (0) target = $region9
    $region8: #{tpu_custom_call.1} parent=1 // pred_region
      %39 = vsyncadd [#allocation6], 0
      %s40 = sshll.u32 %s1, 4
      %s41 = int_to_ptr.hbm [resolvable:$true] %s40
      %s42 = sshll.u32 [#allocation5], 4
      %s43 = int_to_ptr.vmem [resolvable:$true] %s42
      %48 = dma.hbm_to_vmem [thread:$0]  %s41, 256, %s43, [#allocation6], 128, 128, 8
    $region9: #{tpu_custom_call.1} parent=1 // pred_fallthru
      _
    // Predicated region
    $region10: #{tpu_custom_call.1} parent=1 // pred_check
      _
    $region11: #{tpu_custom_call.1} parent=1 // pred_check_branch
      %50 = sbr.rel (0) target = $region13
    $region12: #{tpu_custom_call.1} parent=1 // pred_region
      %52 = vsyncadd [#allocation6], 0
      %s53 = sshll.u32 %s2, 4
      %s54 = int_to_ptr.hbm [resolvable:$true] %s53
      %s55 = sshll.u32 [#allocation7], 4
      %s56 = int_to_ptr.vmem [resolvable:$true] %s55
      %61 = dma.hbm_to_vmem [thread:$0]  %s54, 256, %s56, [#allocation6], 128, 128, 8
    $region13: #{tpu_custom_call.1} parent=1 // pred_fallthru
      _
    // Predicated region
    $region14: #{tpu_custom_call.1} parent=1 // pred_check
      _
    $region15: #{tpu_custom_call.1} parent=1 // pred_check_branch
      %63 = sbr.rel (0) target = $region17
    $region16: #{tpu_custom_call.1} parent=1 // pred_region
      %65 = vsyncadd [#allocation9], 0
      %s66 = sshll.u32 %s3, 4
      %s67 = int_to_ptr.hbm [resolvable:$true] %s66
      %s68 = sshll.u32 [#allocation8], 4
      %s69 = int_to_ptr.vmem [resolvable:$true] %s68
      %74 = dma.hbm_to_vmem [thread:$0]  %s67, 256, %s69, [#allocation9], 128, 128, 8
    $region17: #{tpu_custom_call.1} parent=1 // pred_fallthru
      _
    // Predicated region
    $region18: #{tpu_custom_call.1} parent=1 // pred_check
      _
    $region19: #{tpu_custom_call.1} parent=1 // pred_check_branch
      %76 = sbr.rel (0) target = $region21
    $region20: #{tpu_custom_call.1} parent=1 // pred_region
      _
    $region21: #{tpu_custom_call.1} parent=1 // pred_fallthru
      _
    // Predicated region
    $region22: #{tpu_custom_call.1} parent=1 // pred_check
      _
    $region23: #{tpu_custom_call.1} parent=1 // pred_check_branch
      %78 = sbr.rel (0) target = $region25
    $region24: #{tpu_custom_call.1} parent=1 // pred_region
      _
    $region25: #{tpu_custom_call.1} parent=1 // pred_fallthru
      _
    // Predicated region
    $region26: #{tpu_custom_call.1} parent=1 // pred_check
      _
    $region27: #{tpu_custom_call.1} parent=1 // pred_check_branch
      %80 = sbr.rel (0) target = $region29
    $region28: #{tpu_custom_call.1} parent=1 // pred_region
      _
    $region29: #{tpu_custom_call.1} parent=1 // pred_fallthru
      _
    // Predicated region
    $region30: #{tpu_custom_call.1} parent=1 // pred_check
      _
    $region31: #{tpu_custom_call.1} parent=1 // pred_check_branch
      %82 = sbr.rel (0) target = $region33
    $region32: #{tpu_custom_call.1} parent=1 // pred_region
      _
    $region33: #{tpu_custom_call.1} parent=1 // pred_fallthru
      _
    // Predicated region
    $region34: #{tpu_custom_call.1} parent=1 // pred_check
      _
    $region35: #{tpu_custom_call.1} parent=1 // pred_check_branch
      %84 = sbr.rel (0) target = $region37
    $region36: #{tpu_custom_call.1} parent=1 // pred_region
      _
    $region37: #{tpu_custom_call.1} parent=1 // pred_fallthru
      _
    // Predicated region
    $region38: #{tpu_custom_call.1} parent=1 // pred_check
      _
    $region39: #{tpu_custom_call.1} parent=1 // pred_check_branch
      %86 = sbr.rel (0) target = $region41
    $region40: #{tpu_custom_call.1} parent=1 // pred_region
      _
    $region41: #{tpu_custom_call.1} parent=1 // pred_fallthru
      _
    // Predicated region
    $region42: #{tpu_custom_call.1} parent=1 // pred_check
      _
    $region43: #{tpu_custom_call.1} parent=1 // pred_check_branch
      %88 = sbr.rel (0) target = $region45
    $region44: #{tpu_custom_call.1} parent=1 // pred_region
      _
    $region45: #{tpu_custom_call.1} parent=1 // pred_fallthru
      _
    // Predicated region
    $region46: #{tpu_custom_call.1} parent=1 // pred_check
      _
    $region47: #{tpu_custom_call.1} parent=1 // pred_check_branch
      %90 = sbr.rel (0) target = $region49
    $region48: #{tpu_custom_call.1} parent=1 // pred_region
      _
    $region49: #{tpu_custom_call.1} parent=1 // pred_fallthru
      _
    // Predicated region
    $region50: #{tpu_custom_call.1} parent=1 // pred_check
      _
    $region51: #{tpu_custom_call.1} parent=1 // pred_check_branch
      %92 = sbr.rel (0) target = $region53
    $region52: #{tpu_custom_call.1} parent=1 // pred_region
      _
    $region53: #{tpu_custom_call.1} parent=1 // pred_fallthru
      _
    // Predicated region
    $region54: #{tpu_custom_call.1} parent=1 // pred_check
      _
    $region55: #{tpu_custom_call.1} parent=1 // pred_check_branch
      %94 = sbr.rel (0) target = $region57
    $region56: #{tpu_custom_call.1} parent=1 // pred_region
      _
    $region57: #{tpu_custom_call.1} parent=1 // pred_fallthru
      _
    // Predicated region
    $region58: #{tpu_custom_call.1} parent=1 // pred_check
      _
    $region59: #{tpu_custom_call.1} parent=1 // pred_check_branch
      %96 = sbr.rel (0) target = $region61
    $region60: #{tpu_custom_call.1} parent=1 // pred_region
      %98 = dma.done [#allocation3], 256
    $region61: #{tpu_custom_call.1} parent=1 // pred_fallthru
      _
    // Predicated region
    $region62: #{tpu_custom_call.1} parent=1 // pred_check
      _
    $region63: #{tpu_custom_call.1} parent=1 // pred_check_branch
      %100 = sbr.rel (0) target = $region65
    $region64: #{tpu_custom_call.1} parent=1 // pred_region
      %102 = dma.done [#allocation6], 256
    $region65: #{tpu_custom_call.1} parent=1 // pred_fallthru
      _
    // Predicated region
    $region66: #{tpu_custom_call.1} parent=1 // pred_check
      _
    $region67: #{tpu_custom_call.1} parent=1 // pred_check_branch
      %104 = sbr.rel (0) target = $region69
    $region68: #{tpu_custom_call.1} parent=1 // pred_region
      %106 = dma.done [#allocation6], 256
    $region69: #{tpu_custom_call.1} parent=1 // pred_fallthru
      _
    // Predicated region
    $region70: #{tpu_custom_call.1} parent=1 // pred_check
      _
    $region71: #{tpu_custom_call.1} parent=1 // pred_check_branch
      %108 = sbr.rel (0) target = $region73
    $region72: #{tpu_custom_call.1} parent=1 // pred_region
      %110 = dma.done [#allocation9], 256
    $region73: #{tpu_custom_call.1} parent=1 // pred_fallthru
      _
    %v111 = vld [vmem:[#allocation2] sm:$0xff]
    %v112 = vld [vmem:[#allocation2 + $0x8] sm:$0xff]
    %v113 = vld [vmem:[#allocation5] sm:$0xff]
    %v114 = vld [vmem:[#allocation5 + $0x8] sm:$0xff]
    %v115 = vld [vmem:[#allocation7] sm:$0xff]
    %v116 = vld [vmem:[#allocation7 + $0x8] sm:$0xff]
    %v117 = vld [vmem:[#allocation8] sm:$0xff]
    %v118 = vld [vmem:[#allocation8 + $0x8] sm:$0xff]
    %v119 = vld [vmem:[%s4] sm:$0xff]
    %v120 = vld [vmem:[%s4 + $0x8] sm:$0xff]
    %v121 = vld [vmem:[%s4 + $0x10] sm:$0xff]
    %v122 = vld [vmem:[%s4 + $0x18] sm:$0xff]
    %vm123 = vcmask 261120
    %v125 = vsel %vm123, %v111, 0
    %v128 = vsel %vm123, %v112, 0
    %130 = vmatpush.msra.mxu0 0.0
    %131 = vmatpush.msra.mxu0 0.0
    %132 = vmatpush.msra.mxu0 0.0
    %133 = vmatpush.msra.mxu0 0.0
    %134 = vmatpush.msra.mxu0 0.0
    %135 = vmatpush.msra.mxu0 0.0
    %136 = vmatpush.msra.mxu0 0.0
    %137 = vmatpush.msra.mxu0 0.0
    %138 = vmatpush.msra.mxu0 0.0
    %139 = vmatpush.msra.mxu0 0.0
    %140 = vmatpush.msra.mxu0 0.0
    %141 = vmatpush.msra.mxu0 0.0
    %142 = vmatpush.msra.mxu0 %v122
    %143 = vmatpush.msra.mxu0 %v121
    %144 = vmatpush.msra.mxu0 %v120
    %145 = vmatpush.msra.mxu0 %v119
    %146 = vmatmul.f32.gmra.mxu0 %v125
    %v147 = vpop.f32.mrf.mxu0
    %v148 = vadd.f32 0.0, %v147
    %149 = vmatmul.f32.gmra.mxu0 %v128
    %v150 = vpop.f32.mrf.mxu0
    %v151 = vadd.f32 0.0, %v150
    %152 = vdwg.mxu0
    %v153 = vld [vmem:[%s5] sm:$0xff]
    %v154 = vld [vmem:[%s5 + $0x8] sm:$0xff]
    %v155 = vld [vmem:[%s5 + $0x10] sm:$0xff]
    %v156 = vld [vmem:[%s5 + $0x18] sm:$0xff]
    %vm157 = vcmask 64512
    %v159 = vsel %vm157, %v148, 0
    %v162 = vsel %vm157, %v113, 0
    %164 = vmatpush.xpose.msra.mxu0 0.0
    %165 = vmatpush.xpose.msra.mxu0 0.0
    %166 = vmatpush.xpose.msra.mxu0 0.0
    %167 = vmatpush.xpose.msra.mxu0 0.0
    %168 = vmatpush.xpose.msra.mxu0 0.0
    %169 = vmatpush.xpose.msra.mxu0 0.0
    %170 = vmatpush.xpose.msra.mxu0 0.0
    %171 = vmatpush.xpose.msra.mxu0 0.0
    %172 = vmatpush.xpose.msra.mxu0 0.0
    %173 = vmatpush.xpose.msra.mxu0 0.0
    %174 = vmatpush.xpose.msra.mxu0 0.0
    %175 = vmatpush.xpose.msra.mxu0 0.0
    %176 = vmatpush.xpose.msra.mxu0 0.0
    %177 = vmatpush.xpose.msra.mxu0 0.0
    %178 = vmatpush.xpose.msra.mxu0 0.0
    %179 = vmatpush.xpose.msra.mxu0 %v162
    %180 = vmatmul.f32.gmra.mxu0 %v159
    %v181 = vpop.f32.mrf.mxu0
    %v182 = vadd.f32 0.0, %v181
    %183 = vdwg.mxu0
    %v185 = vsel %vm157, %v151, 0
    %v188 = vsel %vm157, %v114, 0
    %190 = vmatpush.xpose.msra.mxu0 0.0
    %191 = vmatpush.xpose.msra.mxu0 0.0
    %192 = vmatpush.xpose.msra.mxu0 0.0
    %193 = vmatpush.xpose.msra.mxu0 0.0
    %194 = vmatpush.xpose.msra.mxu0 0.0
    %195 = vmatpush.xpose.msra.mxu0 0.0
    %196 = vmatpush.xpose.msra.mxu0 0.0
    %197 = vmatpush.xpose.msra.mxu0 0.0
    %198 = vmatpush.xpose.msra.mxu0 0.0
    %199 = vmatpush.xpose.msra.mxu0 0.0
    %200 = vmatpush.xpose.msra.mxu0 0.0
    %201 = vmatpush.xpose.msra.mxu0 0.0
    %202 = vmatpush.xpose.msra.mxu0 0.0
    %203 = vmatpush.xpose.msra.mxu0 0.0
    %204 = vmatpush.xpose.msra.mxu0 0.0
    %205 = vmatpush.xpose.msra.mxu0 %v188
    %206 = vmatmul.f32.gmra.mxu0 %v185
    %v207 = vpop.f32.mrf.mxu0
    %v208 = vadd.f32 0.0, %v207
    %209 = vdwg.mxu0
    %v210 = vmul.f32 %v182, 0.35355338
    %v211 = vmul.f32 %v208, 0.35355338
    %v212 = vadd.f32 %v210, %v117
    %v213 = vadd.f32 %v211, %v118
    %v214 = vsel %vm157, %v212, -inf
    %215 = vmax.xlane.f32.xlu0 %v214
    %v216 = vpop.xlane.xlu0 %215
    %v217 = vsel %vm157, %v213, -inf
    %218 = vmax.xlane.f32.xlu0 %v217
    %v219 = vpop.xlane.xlu0 %218
    %v220 = vsub.f32 %v212, %v216
    %v221 = vsub.f32 %v213, %v219
    %v222 = vmul.f32 %v220, 1.442695
    %v223 = vpow.pop %v222
    %v224 = vmul.f32 %v221, 1.442695
    %v225 = vpow.pop %v224
    %v226 = vsel %vm157, %v223, 0.0
    %227 = vadd.xlane.f32.xlu0 %v226
    %v228 = vpop.xlane.xlu0 %227
    %v229 = vsel %vm157, %v225, 0.0
    %230 = vadd.xlane.f32.xlu0 %v229
    %v231 = vpop.xlane.xlu0 %230
    %v232 = vrcp.pop %v228
    %v233 = vrcp.pop %v231
    %v234 = vmul.f32 %v223, %v232
    %v235 = vmul.f32 %v225, %v233
    %v237 = vsel %vm157, %v234, 0
    %239 = vmatpush.msra.mxu0 0.0
    %240 = vmatpush.msra.mxu0 0.0
    %241 = vmatpush.msra.mxu0 0.0
    %242 = vmatpush.msra.mxu0 0.0
    %243 = vmatpush.msra.mxu0 0.0
    %244 = vmatpush.msra.mxu0 0.0
    %245 = vmatpush.msra.mxu0 0.0
    %246 = vmatpush.msra.mxu0 0.0
    %247 = vmatpush.msra.mxu0 0.0
    %248 = vmatpush.msra.mxu0 0.0
    %249 = vmatpush.msra.mxu0 0.0
    %250 = vmatpush.msra.mxu0 0.0
    %251 = vmatpush.msra.mxu0 0.0
    %252 = vmatpush.msra.mxu0 0.0
    %253 = vmatpush.msra.mxu0 0.0
    %254 = vmatpush.msra.mxu0 %v115
    %255 = vmatmul.f32.gmra.mxu0 %v237
    %v256 = vpop.f32.mrf.mxu0
    %v257 = vadd.f32 0.0, %v256
    %258 = vdwg.mxu0
    %v260 = vsel %vm157, %v235, 0
    %262 = vmatpush.msra.mxu0 0.0
    %263 = vmatpush.msra.mxu0 0.0
    %264 = vmatpush.msra.mxu0 0.0
    %265 = vmatpush.msra.mxu0 0.0
    %266 = vmatpush.msra.mxu0 0.0
    %267 = vmatpush.msra.mxu0 0.0
    %268 = vmatpush.msra.mxu0 0.0
    %269 = vmatpush.msra.mxu0 0.0
    %270 = vmatpush.msra.mxu0 0.0
    %271 = vmatpush.msra.mxu0 0.0
    %272 = vmatpush.msra.mxu0 0.0
    %273 = vmatpush.msra.mxu0 0.0
    %274 = vmatpush.msra.mxu0 0.0
    %275 = vmatpush.msra.mxu0 0.0
    %276 = vmatpush.msra.mxu0 0.0
    %277 = vmatpush.msra.mxu0 %v116
    %278 = vmatmul.f32.gmra.mxu0 %v260
    %v279 = vpop.f32.mrf.mxu0
    %v280 = vadd.f32 0.0, %v279
    %281 = vdwg.mxu0
    %282 = vrot.lane.b32.xlu0 %v148, 120
    %v283 = vpop.permute.xlu0 %282
    %284 = vrot.lane.b32.xlu0 %v113, 120
    %v285 = vpop.permute.xlu0 %284
    %v286 = vsel %vm157, %v283, 0
    %v288 = vsel %vm157, %v285, 0
    %290 = vmatpush.xpose.msra.mxu0 0.0
    %291 = vmatpush.xpose.msra.mxu0 0.0
    %292 = vmatpush.xpose.msra.mxu0 0.0
    %293 = vmatpush.xpose.msra.mxu0 0.0
    %294 = vmatpush.xpose.msra.mxu0 0.0
    %295 = vmatpush.xpose.msra.mxu0 0.0
    %296 = vmatpush.xpose.msra.mxu0 0.0
    %297 = vmatpush.xpose.msra.mxu0 0.0
    %298 = vmatpush.xpose.msra.mxu0 0.0
    %299 = vmatpush.xpose.msra.mxu0 0.0
    %300 = vmatpush.xpose.msra.mxu0 0.0
    %301 = vmatpush.xpose.msra.mxu0 0.0
    %302 = vmatpush.xpose.msra.mxu0 0.0
    %303 = vmatpush.xpose.msra.mxu0 0.0
    %304 = vmatpush.xpose.msra.mxu0 0.0
    %305 = vmatpush.xpose.msra.mxu0 %v288
    %306 = vmatmul.f32.gmra.mxu0 %v286
    %v307 = vpop.f32.mrf.mxu0
    %v308 = vadd.f32 0.0, %v307
    %309 = vdwg.mxu0
    %310 = vrot.lane.b32.xlu0 %v151, 120
    %v311 = vpop.permute.xlu0 %310
    %312 = vrot.lane.b32.xlu0 %v114, 120
    %v313 = vpop.permute.xlu0 %312
    %v314 = vsel %vm157, %v311, 0
    %v316 = vsel %vm157, %v313, 0
    %318 = vmatpush.xpose.msra.mxu0 0.0
    %319 = vmatpush.xpose.msra.mxu0 0.0
    %320 = vmatpush.xpose.msra.mxu0 0.0
    %321 = vmatpush.xpose.msra.mxu0 0.0
    %322 = vmatpush.xpose.msra.mxu0 0.0
    %323 = vmatpush.xpose.msra.mxu0 0.0
    %324 = vmatpush.xpose.msra.mxu0 0.0
    %325 = vmatpush.xpose.msra.mxu0 0.0
    %326 = vmatpush.xpose.msra.mxu0 0.0
    %327 = vmatpush.xpose.msra.mxu0 0.0
    %328 = vmatpush.xpose.msra.mxu0 0.0
    %329 = vmatpush.xpose.msra.mxu0 0.0
    %330 = vmatpush.xpose.msra.mxu0 0.0
    %331 = vmatpush.xpose.msra.mxu0 0.0
    %332 = vmatpush.xpose.msra.mxu0 0.0
    %333 = vmatpush.xpose.msra.mxu0 %v316
    %334 = vmatmul.f32.gmra.mxu0 %v314
    %v335 = vpop.f32.mrf.mxu0
    %v336 = vadd.f32 0.0, %v335
    %337 = vdwg.mxu0
    %v338 = vmul.f32 %v308, 0.35355338
    %v339 = vmul.f32 %v336, 0.35355338
    %v340 = vadd.f32 %v338, %v117
    %v341 = vadd.f32 %v339, %v118
    %v342 = vsel %vm157, %v340, -inf
    %343 = vmax.xlane.f32.xlu0 %v342
    %v344 = vpop.xlane.xlu0 %343
    %v345 = vsel %vm157, %v341, -inf
    %346 = vmax.xlane.f32.xlu0 %v345
    %v347 = vpop.xlane.xlu0 %346
    %v348 = vsub.f32 %v340, %v344
    %v349 = vsub.f32 %v341, %v347
    %v350 = vmul.f32 %v348, 1.442695
    %v351 = vpow.pop %v350
    %v352 = vmul.f32 %v349, 1.442695
    %v353 = vpow.pop %v352
    %v354 = vsel %vm157, %v351, 0.0
    %355 = vadd.xlane.f32.xlu0 %v354
    %v356 = vpop.xlane.xlu0 %355
    %v357 = vsel %vm157, %v353, 0.0
    %358 = vadd.xlane.f32.xlu0 %v357
    %v359 = vpop.xlane.xlu0 %358
    %v360 = vrcp.pop %v356
    %v361 = vrcp.pop %v359
    %v362 = vmul.f32 %v351, %v360
    %v363 = vmul.f32 %v353, %v361
    %365 = vrot.lane.b32.xlu0 %v115, 120
    %v366 = vpop.permute.xlu0 %365
    %v369 = vsel %vm157, %v362, 0
    %371 = vmatpush.msra.mxu0 0.0
    %372 = vmatpush.msra.mxu0 0.0
    %373 = vmatpush.msra.mxu0 0.0
    %374 = vmatpush.msra.mxu0 0.0
    %375 = vmatpush.msra.mxu0 0.0
    %376 = vmatpush.msra.mxu0 0.0
    %377 = vmatpush.msra.mxu0 0.0
    %378 = vmatpush.msra.mxu0 0.0
    %379 = vmatpush.msra.mxu0 0.0
    %380 = vmatpush.msra.mxu0 0.0
    %381 = vmatpush.msra.mxu0 0.0
    %382 = vmatpush.msra.mxu0 0.0
    %383 = vmatpush.msra.mxu0 0.0
    %384 = vmatpush.msra.mxu0 0.0
    %385 = vmatpush.msra.mxu0 0.0
    %386 = vmatpush.msra.mxu0 %v366
    %387 = vmatmul.f32.gmra.mxu0 %v369
    %v388 = vpop.f32.mrf.mxu0
    %v389 = vadd.f32 0.0, %v388
    %390 = vdwg.mxu0
    %392 = vrot.lane.b32.xlu0 %v116, 120
    %v393 = vpop.permute.xlu0 %392
    %v396 = vsel %vm157, %v363, 0
    %398 = vmatpush.msra.mxu0 0.0
    %399 = vmatpush.msra.mxu0 0.0
    %400 = vmatpush.msra.mxu0 0.0
    %401 = vmatpush.msra.mxu0 0.0
    %402 = vmatpush.msra.mxu0 0.0
    %403 = vmatpush.msra.mxu0 0.0
    %404 = vmatpush.msra.mxu0 0.0
    %405 = vmatpush.msra.mxu0 0.0
    %406 = vmatpush.msra.mxu0 0.0
    %407 = vmatpush.msra.mxu0 0.0
    %408 = vmatpush.msra.mxu0 0.0
    %409 = vmatpush.msra.mxu0 0.0
    %410 = vmatpush.msra.mxu0 0.0
    %411 = vmatpush.msra.mxu0 0.0
    %412 = vmatpush.msra.mxu0 0.0
    %413 = vmatpush.msra.mxu0 %v393
    %414 = vmatmul.f32.gmra.mxu0 %v396
    %v415 = vpop.f32.mrf.mxu0
    %v416 = vadd.f32 0.0, %v415
    %417 = vdwg.mxu0
    %v419 = vsel %vm157, %v389, 0
    %v422 = vsel %vm157, %v416, 0
    %424 = vmatpush.msra.mxu0 0.0
    %425 = vmatpush.msra.mxu0 0.0
    %426 = vmatpush.msra.mxu0 0.0
    %427 = vmatpush.msra.mxu0 0.0
    %428 = vmatpush.msra.mxu0 0.0
    %429 = vmatpush.msra.mxu0 0.0
    %430 = vmatpush.msra.mxu0 0.0
    %431 = vmatpush.msra.mxu0 0.0
    %432 = vmatpush.msra.mxu0 0.0
    %433 = vmatpush.msra.mxu0 0.0
    %434 = vmatpush.msra.mxu0 0.0
    %435 = vmatpush.msra.mxu0 0.0
    %436 = vmatpush.msra.mxu0 0.0
    %437 = vmatpush.msra.mxu0 0.0
    %438 = vmatpush.msra.mxu0 0.0
    %439 = vmatpush.msra.mxu0 %v154
    %440 = vmatmul.f32.gmra.mxu0 %v419
    %v441 = vpop.f32.mrf.mxu0
    %v442 = vadd.f32 0.0, %v441
    %443 = vmatmul.f32.gmra.mxu0 %v422
    %v444 = vpop.f32.mrf.mxu0
    %v445 = vadd.f32 0.0, %v444
    %446 = vdwg.mxu0
    %v448 = vsel %vm157, %v257, 0
    %v451 = vsel %vm157, %v280, 0
    %453 = vmatpush.msra.mxu0 0.0
    %454 = vmatpush.msra.mxu0 0.0
    %455 = vmatpush.msra.mxu0 0.0
    %456 = vmatpush.msra.mxu0 0.0
    %457 = vmatpush.msra.mxu0 0.0
    %458 = vmatpush.msra.mxu0 0.0
    %459 = vmatpush.msra.mxu0 0.0
    %460 = vmatpush.msra.mxu0 0.0
    %461 = vmatpush.msra.mxu0 0.0
    %462 = vmatpush.msra.mxu0 0.0
    %463 = vmatpush.msra.mxu0 0.0
    %464 = vmatpush.msra.mxu0 0.0
    %465 = vmatpush.msra.mxu0 0.0
    %466 = vmatpush.msra.mxu0 0.0
    %467 = vmatpush.msra.mxu0 0.0
    %468 = vmatpush.msra.mxu0 %v153
    %469 = vmatmul.f32.gmra.mxu0 %v448
    %v470 = vpop.f32.mrf.mxu0
    %v471 = vadd.f32 %v442, %v470
    %472 = vmatmul.f32.gmra.mxu0 %v451
    %v473 = vpop.f32.mrf.mxu0
    %v474 = vadd.f32 %v445, %v473
    %475 = vdwg.mxu0
    %476 = vrot.lane.b32.xlu0 %v148, 112
    %v477 = vpop.permute.xlu0 %476
    %478 = vrot.lane.b32.xlu0 %v113, 112
    %v479 = vpop.permute.xlu0 %478
    %v480 = vsel %vm157, %v477, 0
    %v482 = vsel %vm157, %v479, 0
    %484 = vmatpush.xpose.msra.mxu0 0.0
    %485 = vmatpush.xpose.msra.mxu0 0.0
    %486 = vmatpush.xpose.msra.mxu0 0.0
    %487 = vmatpush.xpose.msra.mxu0 0.0
    %488 = vmatpush.xpose.msra.mxu0 0.0
    %489 = vmatpush.xpose.msra.mxu0 0.0
    %490 = vmatpush.xpose.msra.mxu0 0.0
    %491 = vmatpush.xpose.msra.mxu0 0.0
    %492 = vmatpush.xpose.msra.mxu0 0.0
    %493 = vmatpush.xpose.msra.mxu0 0.0
    %494 = vmatpush.xpose.msra.mxu0 0.0
    %495 = vmatpush.xpose.msra.mxu0 0.0
    %496 = vmatpush.xpose.msra.mxu0 0.0
    %497 = vmatpush.xpose.msra.mxu0 0.0
    %498 = vmatpush.xpose.msra.mxu0 0.0
    %499 = vmatpush.xpose.msra.mxu0 %v482
    %500 = vmatmul.f32.gmra.mxu0 %v480
    %v501 = vpop.f32.mrf.mxu0
    %v502 = vadd.f32 0.0, %v501
    %503 = vdwg.mxu0
    %504 = vrot.lane.b32.xlu0 %v151, 112
    %v505 = vpop.permute.xlu0 %504
    %506 = vrot.lane.b32.xlu0 %v114, 112
    %v507 = vpop.permute.xlu0 %506
    %v508 = vsel %vm157, %v505, 0
    %v510 = vsel %vm157, %v507, 0
    %512 = vmatpush.xpose.msra.mxu0 0.0
    %513 = vmatpush.xpose.msra.mxu0 0.0
    %514 = vmatpush.xpose.msra.mxu0 0.0
    %515 = vmatpush.xpose.msra.mxu0 0.0
    %516 = vmatpush.xpose.msra.mxu0 0.0
    %517 = vmatpush.xpose.msra.mxu0 0.0
    %518 = vmatpush.xpose.msra.mxu0 0.0
    %519 = vmatpush.xpose.msra.mxu0 0.0
    %520 = vmatpush.xpose.msra.mxu0 0.0
    %521 = vmatpush.xpose.msra.mxu0 0.0
    %522 = vmatpush.xpose.msra.mxu0 0.0
    %523 = vmatpush.xpose.msra.mxu0 0.0
    %524 = vmatpush.xpose.msra.mxu0 0.0
    %525 = vmatpush.xpose.msra.mxu0 0.0
    %526 = vmatpush.xpose.msra.mxu0 0.0
    %527 = vmatpush.xpose.msra.mxu0 %v510
    %528 = vmatmul.f32.gmra.mxu0 %v508
    %v529 = vpop.f32.mrf.mxu0
    %v530 = vadd.f32 0.0, %v529
    %531 = vdwg.mxu0
    %v532 = vmul.f32 %v502, 0.35355338
    %v533 = vmul.f32 %v530, 0.35355338
    %v534 = vadd.f32 %v532, %v117
    %v535 = vadd.f32 %v533, %v118
    %v536 = vsel %vm157, %v534, -inf
    %537 = vmax.xlane.f32.xlu0 %v536
    %v538 = vpop.xlane.xlu0 %537
    %v539 = vsel %vm157, %v535, -inf
    %540 = vmax.xlane.f32.xlu0 %v539
    %v541 = vpop.xlane.xlu0 %540
    %v542 = vsub.f32 %v534, %v538
    %v543 = vsub.f32 %v535, %v541
    %v544 = vmul.f32 %v542, 1.442695
    %v545 = vpow.pop %v544
    %v546 = vmul.f32 %v543, 1.442695
    %v547 = vpow.pop %v546
    %v548 = vsel %vm157, %v545, 0.0
    %549 = vadd.xlane.f32.xlu0 %v548
    %v550 = vpop.xlane.xlu0 %549
    %v551 = vsel %vm157, %v547, 0.0
    %552 = vadd.xlane.f32.xlu0 %v551
    %v553 = vpop.xlane.xlu0 %552
    %v554 = vrcp.pop %v550
    %v555 = vrcp.pop %v553
    %v556 = vmul.f32 %v545, %v554
    %v557 = vmul.f32 %v547, %v555
    %558 = vrot.lane.b32.xlu0 %v115, 112
    %v559 = vpop.permute.xlu0 %558
    %v562 = vsel %vm157, %v556, 0
    %564 = vmatpush.msra.mxu0 0.0
    %565 = vmatpush.msra.mxu0 0.0
    %566 = vmatpush.msra.mxu0 0.0
    %567 = vmatpush.msra.mxu0 0.0
    %568 = vmatpush.msra.mxu0 0.0
    %569 = vmatpush.msra.mxu0 0.0
    %570 = vmatpush.msra.mxu0 0.0
    %571 = vmatpush.msra.mxu0 0.0
    %572 = vmatpush.msra.mxu0 0.0
    %573 = vmatpush.msra.mxu0 0.0
    %574 = vmatpush.msra.mxu0 0.0
    %575 = vmatpush.msra.mxu0 0.0
    %576 = vmatpush.msra.mxu0 0.0
    %577 = vmatpush.msra.mxu0 0.0
    %578 = vmatpush.msra.mxu0 0.0
    %579 = vmatpush.msra.mxu0 %v559
    %580 = vmatmul.f32.gmra.mxu0 %v562
    %v581 = vpop.f32.mrf.mxu0
    %v582 = vadd.f32 0.0, %v581
    %583 = vdwg.mxu0
    %584 = vrot.lane.b32.xlu0 %v116, 112
    %v585 = vpop.permute.xlu0 %584
    %v588 = vsel %vm157, %v557, 0
    %590 = vmatpush.msra.mxu0 0.0
    %591 = vmatpush.msra.mxu0 0.0
    %592 = vmatpush.msra.mxu0 0.0
    %593 = vmatpush.msra.mxu0 0.0
    %594 = vmatpush.msra.mxu0 0.0
    %595 = vmatpush.msra.mxu0 0.0
    %596 = vmatpush.msra.mxu0 0.0
    %597 = vmatpush.msra.mxu0 0.0
    %598 = vmatpush.msra.mxu0 0.0
    %599 = vmatpush.msra.mxu0 0.0
    %600 = vmatpush.msra.mxu0 0.0
    %601 = vmatpush.msra.mxu0 0.0
    %602 = vmatpush.msra.mxu0 0.0
    %603 = vmatpush.msra.mxu0 0.0
    %604 = vmatpush.msra.mxu0 0.0
    %605 = vmatpush.msra.mxu0 %v585
    %606 = vmatmul.f32.gmra.mxu0 %v588
    %v607 = vpop.f32.mrf.mxu0
    %v608 = vadd.f32 0.0, %v607
    %609 = vdwg.mxu0
    %v611 = vsel %vm157, %v582, 0
    %v614 = vsel %vm157, %v608, 0
    %616 = vmatpush.msra.mxu0 0.0
    %617 = vmatpush.msra.mxu0 0.0
    %618 = vmatpush.msra.mxu0 0.0
    %619 = vmatpush.msra.mxu0 0.0
    %620 = vmatpush.msra.mxu0 0.0
    %621 = vmatpush.msra.mxu0 0.0
    %622 = vmatpush.msra.mxu0 0.0
    %623 = vmatpush.msra.mxu0 0.0
    %624 = vmatpush.msra.mxu0 0.0
    %625 = vmatpush.msra.mxu0 0.0
    %626 = vmatpush.msra.mxu0 0.0
    %627 = vmatpush.msra.mxu0 0.0
    %628 = vmatpush.msra.mxu0 0.0
    %629 = vmatpush.msra.mxu0 0.0
    %630 = vmatpush.msra.mxu0 0.0
    %631 = vmatpush.msra.mxu0 %v155
    %632 = vmatmul.f32.gmra.mxu0 %v611
    %v633 = vpop.f32.mrf.mxu0
    %v634 = vadd.f32 0.0, %v633
    %635 = vmatmul.f32.gmra.mxu0 %v614
    %v636 = vpop.f32.mrf.mxu0
    %v637 = vadd.f32 0.0, %v636
    %638 = vdwg.mxu0
    %v639 = vadd.f32 %v471, %v634
    %v640 = vadd.f32 %v474, %v637
    %641 = vrot.lane.b32.xlu0 %v148, 104
    %v642 = vpop.permute.xlu0 %641
    %643 = vrot.lane.b32.xlu0 %v113, 104
    %v644 = vpop.permute.xlu0 %643
    %v645 = vsel %vm157, %v642, 0
    %v647 = vsel %vm157, %v644, 0
    %649 = vmatpush.xpose.msra.mxu0 0.0
    %650 = vmatpush.xpose.msra.mxu0 0.0
    %651 = vmatpush.xpose.msra.mxu0 0.0
    %652 = vmatpush.xpose.msra.mxu0 0.0
    %653 = vmatpush.xpose.msra.mxu0 0.0
    %654 = vmatpush.xpose.msra.mxu0 0.0
    %655 = vmatpush.xpose.msra.mxu0 0.0
    %656 = vmatpush.xpose.msra.mxu0 0.0
    %657 = vmatpush.xpose.msra.mxu0 0.0
    %658 = vmatpush.xpose.msra.mxu0 0.0
    %659 = vmatpush.xpose.msra.mxu0 0.0
    %660 = vmatpush.xpose.msra.mxu0 0.0
    %661 = vmatpush.xpose.msra.mxu0 0.0
    %662 = vmatpush.xpose.msra.mxu0 0.0
    %663 = vmatpush.xpose.msra.mxu0 0.0
    %664 = vmatpush.xpose.msra.mxu0 %v647
    %665 = vmatmul.f32.gmra.mxu0 %v645
    %v666 = vpop.f32.mrf.mxu0
    %v667 = vadd.f32 0.0, %v666
    %668 = vdwg.mxu0
    %669 = vrot.lane.b32.xlu0 %v151, 104
    %v670 = vpop.permute.xlu0 %669
    %671 = vrot.lane.b32.xlu0 %v114, 104
    %v672 = vpop.permute.xlu0 %671
    %v673 = vsel %vm157, %v670, 0
    %v675 = vsel %vm157, %v672, 0
    %677 = vmatpush.xpose.msra.mxu0 0.0
    %678 = vmatpush.xpose.msra.mxu0 0.0
    %679 = vmatpush.xpose.msra.mxu0 0.0
    %680 = vmatpush.xpose.msra.mxu0 0.0
    %681 = vmatpush.xpose.msra.mxu0 0.0
    %682 = vmatpush.xpose.msra.mxu0 0.0
    %683 = vmatpush.xpose.msra.mxu0 0.0
    %684 = vmatpush.xpose.msra.mxu0 0.0
    %685 = vmatpush.xpose.msra.mxu0 0.0
    %686 = vmatpush.xpose.msra.mxu0 0.0
    %687 = vmatpush.xpose.msra.mxu0 0.0
    %688 = vmatpush.xpose.msra.mxu0 0.0
    %689 = vmatpush.xpose.msra.mxu0 0.0
    %690 = vmatpush.xpose.msra.mxu0 0.0
    %691 = vmatpush.xpose.msra.mxu0 0.0
    %692 = vmatpush.xpose.msra.mxu0 %v675
    %693 = vmatmul.f32.gmra.mxu0 %v673
    %v694 = vpop.f32.mrf.mxu0
    %v695 = vadd.f32 0.0, %v694
    %696 = vdwg.mxu0
    %v697 = vmul.f32 %v667, 0.35355338
    %v698 = vmul.f32 %v695, 0.35355338
    %v699 = vadd.f32 %v697, %v117
    %v700 = vadd.f32 %v698, %v118
    %v701 = vsel %vm157, %v699, -inf
    %702 = vmax.xlane.f32.xlu0 %v701
    %v703 = vpop.xlane.xlu0 %702
    %v704 = vsel %vm157, %v700, -inf
    %705 = vmax.xlane.f32.xlu0 %v704
    %v706 = vpop.xlane.xlu0 %705
    %v707 = vsub.f32 %v699, %v703
    %v708 = vsub.f32 %v700, %v706
    %v709 = vmul.f32 %v707, 1.442695
    %v710 = vpow.pop %v709
    %v711 = vmul.f32 %v708, 1.442695
    %v712 = vpow.pop %v711
    %v713 = vsel %vm157, %v710, 0.0
    %714 = vadd.xlane.f32.xlu0 %v713
    %v715 = vpop.xlane.xlu0 %714
    %v716 = vsel %vm157, %v712, 0.0
    %717 = vadd.xlane.f32.xlu0 %v716
    %v718 = vpop.xlane.xlu0 %717
    %v719 = vrcp.pop %v715
    %v720 = vrcp.pop %v718
    %v721 = vmul.f32 %v710, %v719
    %v722 = vmul.f32 %v712, %v720
    %723 = vrot.lane.b32.xlu0 %v115, 104
    %v724 = vpop.permute.xlu0 %723
    %v727 = vsel %vm157, %v721, 0
    %729 = vmatpush.msra.mxu0 0.0
    %730 = vmatpush.msra.mxu0 0.0
    %731 = vmatpush.msra.mxu0 0.0
    %732 = vmatpush.msra.mxu0 0.0
    %733 = vmatpush.msra.mxu0 0.0
    %734 = vmatpush.msra.mxu0 0.0
    %735 = vmatpush.msra.mxu0 0.0
    %736 = vmatpush.msra.mxu0 0.0
    %737 = vmatpush.msra.mxu0 0.0
    %738 = vmatpush.msra.mxu0 0.0
    %739 = vmatpush.msra.mxu0 0.0
    %740 = vmatpush.msra.mxu0 0.0
    %741 = vmatpush.msra.mxu0 0.0
    %742 = vmatpush.msra.mxu0 0.0
    %743 = vmatpush.msra.mxu0 0.0
    %744 = vmatpush.msra.mxu0 %v724
    %745 = vmatmul.f32.gmra.mxu0 %v727
    %v746 = vpop.f32.mrf.mxu0
    %v747 = vadd.f32 0.0, %v746
    %748 = vdwg.mxu0
    %749 = vrot.lane.b32.xlu0 %v116, 104
    %v750 = vpop.permute.xlu0 %749
    %v753 = vsel %vm157, %v722, 0
    %755 = vmatpush.msra.mxu0 0.0
    %756 = vmatpush.msra.mxu0 0.0
    %757 = vmatpush.msra.mxu0 0.0
    %758 = vmatpush.msra.mxu0 0.0
    %759 = vmatpush.msra.mxu0 0.0
    %760 = vmatpush.msra.mxu0 0.0
    %761 = vmatpush.msra.mxu0 0.0
    %762 = vmatpush.msra.mxu0 0.0
    %763 = vmatpush.msra.mxu0 0.0
    %764 = vmatpush.msra.mxu0 0.0
    %765 = vmatpush.msra.mxu0 0.0
    %766 = vmatpush.msra.mxu0 0.0
    %767 = vmatpush.msra.mxu0 0.0
    %768 = vmatpush.msra.mxu0 0.0
    %769 = vmatpush.msra.mxu0 0.0
    %770 = vmatpush.msra.mxu0 %v750
    %771 = vmatmul.f32.gmra.mxu0 %v753
    %v772 = vpop.f32.mrf.mxu0
    %v773 = vadd.f32 0.0, %v772
    %774 = vdwg.mxu0
    %v776 = vsel %vm157, %v747, 0
    %v779 = vsel %vm157, %v773, 0
    %781 = vmatpush.msra.mxu0 0.0
    %782 = vmatpush.msra.mxu0 0.0
    %783 = vmatpush.msra.mxu0 0.0
    %784 = vmatpush.msra.mxu0 0.0
    %785 = vmatpush.msra.mxu0 0.0
    %786 = vmatpush.msra.mxu0 0.0
    %787 = vmatpush.msra.mxu0 0.0
    %788 = vmatpush.msra.mxu0 0.0
    %789 = vmatpush.msra.mxu0 0.0
    %790 = vmatpush.msra.mxu0 0.0
    %791 = vmatpush.msra.mxu0 0.0
    %792 = vmatpush.msra.mxu0 0.0
    %793 = vmatpush.msra.mxu0 0.0
    %794 = vmatpush.msra.mxu0 0.0
    %795 = vmatpush.msra.mxu0 0.0
    %796 = vmatpush.msra.mxu0 %v156
    %797 = vmatmul.f32.gmra.mxu0 %v776
    %v798 = vpop.f32.mrf.mxu0
    %v799 = vadd.f32 0.0, %v798
    %800 = vmatmul.f32.gmra.mxu0 %v779
    %v801 = vpop.f32.mrf.mxu0
    %v802 = vadd.f32 0.0, %v801
    %803 = vdwg.mxu0
    %v804 = vadd.f32 %v639, %v799
    %v805 = vadd.f32 %v640, %v802
    %v806 = vadd.f32 %v111, %v804
    %v807 = vadd.f32 %v112, %v805
    %v808 = vld [vmem:[%s6] sm:$0x1]
    %v809 = vld [vmem:[%s7] sm:$0x1]
    %v810 = vsel %vm123, %v806, 0.0
    %811 = vadd.xlane.f32.xlu0 %v810
    %v812 = vpop.xlane.xlu0 %811
    %v813 = vsel %vm123, %v807, 0.0
    %814 = vadd.xlane.f32.xlu0 %v813
    %v815 = vpop.xlane.xlu0 %814
    %v816 = vrcp.pop 32.0
    %v817 = vmul.f32 32.0, %v816
    %v818 = vsub.f32 1.0, %v817
    %v819 = vmul.f32 %v816, %v818
    %v820 = vadd.f32 %v816, %v819
    %vm821 = vweird.f32 %v816
    %v822 = vsel %vm821, %v816, %v820
    %v823 = vmul.f32 %v812, %v822
    %v824 = vmul.f32 %v815, %v822
    %v825 = vsub.f32 %v806, %v823
    %v826 = vsub.f32 %v807, %v824
    %v827 = vmul.f32 %v825, %v825
    %v828 = vmul.f32 %v826, %v826
    %v829 = vsel %vm123, %v827, 0.0
    %830 = vadd.xlane.f32.xlu0 %v829
    %v831 = vpop.xlane.xlu0 %830
    %v832 = vsel %vm123, %v828, 0.0
    %833 = vadd.xlane.f32.xlu0 %v832
    %v834 = vpop.xlane.xlu0 %833
    %v835 = vmul.f32 %v831, 0.032258064
    %v836 = vmul.f32 %v834, 0.032258064
    %v837 = vrsqrt.pop %v835
    %v838 = vmul.f32 %v837, %v835
    %v839 = vmul.f32 %v838, %v837
    %v840 = vmul.f32 0.5, %v839
    %v841 = vsub.f32 1.5, %v840
    %v842 = vmul.f32 %v837, %v841
    %v843 = vmul.f32 %v835, %v842
    %vm844 = vcmp.eq.f32.partialorder %v835, inf
    %v845 = vsel %vm844, %v835, %v843
    %vm846 = vcmp.eq.f32.partialorder %v835, 0.0
    %v847 = vand.u32 %v835, 2147483648
    %v848 = vsel %vm846, %v847, %v845
    %v849 = vrsqrt.pop %v836
    %v850 = vmul.f32 %v849, %v836
    %v851 = vmul.f32 %v850, %v849
    %v852 = vmul.f32 0.5, %v851
    %v853 = vsub.f32 1.5, %v852
    %v854 = vmul.f32 %v849, %v853
    %v855 = vmul.f32 %v836, %v854
    %vm856 = vcmp.eq.f32.partialorder %v836, inf
    %v857 = vsel %vm856, %v836, %v855
    %vm858 = vcmp.eq.f32.partialorder %v836, 0.0
    %v859 = vand.u32 %v836, 2147483648
    %v860 = vsel %vm858, %v859, %v857
    %v861 = vadd.f32 %v848, 1e-06
    %v862 = vadd.f32 %v860, 1e-06
    %v863 = vrcp.pop %v861
    %v864 = vrcp.pop %v862
    %v866 = vperm.slane %v808, 0
    %v868 = vmul.f32 %v866, %v825
    %v869 = vmul.f32 %v866, %v826
    %v870 = vmul.f32 %v868, %v863
    %v871 = vmul.f32 %v869, %v864
    %v873 = vperm.slane %v809, 0
    %v875 = vadd.f32 %v870, %v873
    %v876 = vadd.f32 %v871, %v873
    %v877 = vld [vmem:[%s8] sm:$0xff]
    %v878 = vld [vmem:[%s8 + $0x8] sm:$0xff]
    %v879 = vld [vmem:[%s8 + $0x10] sm:$0xff]
    %v880 = vld [vmem:[%s8 + $0x18] sm:$0xff]
    %v881 = vld [vmem:[%s9] sm:$0x1]
    %v883 = vperm.slane %v881, 0
    %v886 = vsel %vm123, %v875, 0
    %v889 = vsel %vm123, %v876, 0
    %891 = vmatpush.msra.mxu0 0.0
    %892 = vmatpush.msra.mxu0 0.0
    %893 = vmatpush.msra.mxu0 0.0
    %894 = vmatpush.msra.mxu0 0.0
    %895 = vmatpush.msra.mxu0 0.0
    %896 = vmatpush.msra.mxu0 0.0
    %897 = vmatpush.msra.mxu0 0.0
    %898 = vmatpush.msra.mxu0 0.0
    %899 = vmatpush.msra.mxu0 0.0
    %900 = vmatpush.msra.mxu0 0.0
    %901 = vmatpush.msra.mxu0 0.0
    %902 = vmatpush.msra.mxu0 0.0
    %903 = vmatpush.msra.mxu0 %v880
    %904 = vmatpush.msra.mxu0 %v879
    %905 = vmatpush.msra.mxu0 %v878
    %906 = vmatpush.msra.mxu0 %v877
    %907 = vmatmul.f32.gmra.mxu0 %v886
    %v908 = vpop.f32.mrf.mxu0
    %v909 = vadd.f32 %v883, %v908
    %910 = vmatmul.f32.gmra.mxu0 %v889
    %v911 = vpop.f32.mrf.mxu0
    %v912 = vadd.f32 %v883, %v911
    %913 = vdwg.mxu0
    %v914 = vmax.f32 %v909, 0.0
    %v915 = vmax.f32 %v912, 0.0
    %v916 = vld [vmem:[%s10] sm:$0xff]
    %v917 = vld [vmem:[%s10 + $0x8] sm:$0xff]
    %v918 = vld [vmem:[%s10 + $0x10] sm:$0xff]
    %v919 = vld [vmem:[%s10 + $0x18] sm:$0xff]
    %v920 = vld [vmem:[%s10 + $0x20] sm:$0xff]
    %v921 = vld [vmem:[%s10 + $0x28] sm:$0xff]
    %v922 = vld [vmem:[%s10 + $0x30] sm:$0xff]
    %v923 = vld [vmem:[%s10 + $0x38] sm:$0xff]
    %v924 = vld [vmem:[%s11] sm:$0x1]
    %v926 = vperm.slane %v924, 0
    %vm928 = vcmask 523264
    %v930 = vsel %vm928, %v914, 0
    %v933 = vsel %vm928, %v915, 0
    %935 = vmatpush.msra.mxu0 0.0
    %936 = vmatpush.msra.mxu0 0.0
    %937 = vmatpush.msra.mxu0 0.0
    %938 = vmatpush.msra.mxu0 0.0
    %939 = vmatpush.msra.mxu0 0.0
    %940 = vmatpush.msra.mxu0 0.0
    %941 = vmatpush.msra.mxu0 0.0
    %942 = vmatpush.msra.mxu0 0.0
    %943 = vmatpush.msra.mxu0 %v923
    %944 = vmatpush.msra.mxu0 %v922
    %945 = vmatpush.msra.mxu0 %v921
    %946 = vmatpush.msra.mxu0 %v920
    %947 = vmatpush.msra.mxu0 %v919
    %948 = vmatpush.msra.mxu0 %v918
    %949 = vmatpush.msra.mxu0 %v917
    %950 = vmatpush.msra.mxu0 %v916
    %951 = vmatmul.f32.gmra.mxu0 %v930
    %v952 = vpop.f32.mrf.mxu0
    %v953 = vadd.f32 %v926, %v952
    %954 = vmatmul.f32.gmra.mxu0 %v933
    %v955 = vpop.f32.mrf.mxu0
    %v956 = vadd.f32 %v926, %v955
    %957 = vdwg.mxu0
    %v958 = vadd.f32 %v953, %v875
    %v959 = vadd.f32 %v956, %v876
    %v960 = vld [vmem:[%s12] sm:$0x1]
    %v961 = vld [vmem:[%s13] sm:$0x1]
    %v962 = vsel %vm123, %v958, 0.0
    %963 = vadd.xlane.f32.xlu0 %v962
    %v964 = vpop.xlane.xlu0 %963
    %v965 = vsel %vm123, %v959, 0.0
    %966 = vadd.xlane.f32.xlu0 %v965
    %v967 = vpop.xlane.xlu0 %966
    %v968 = vmul.f32 %v964, %v822
    %v969 = vmul.f32 %v967, %v822
    %v970 = vsub.f32 %v958, %v968
    %v971 = vsub.f32 %v959, %v969
    %v972 = vmul.f32 %v970, %v970
    %v973 = vmul.f32 %v971, %v971
    %v974 = vsel %vm123, %v972, 0.0
    %975 = vadd.xlane.f32.xlu0 %v974
    %v976 = vpop.xlane.xlu0 %975
    %v977 = vsel %vm123, %v973, 0.0
    %978 = vadd.xlane.f32.xlu0 %v977
    %v979 = vpop.xlane.xlu0 %978
    %v980 = vmul.f32 %v976, 0.032258064
    %v981 = vmul.f32 %v979, 0.032258064
    %v982 = vrsqrt.pop %v980
    %v983 = vmul.f32 %v982, %v980
    %v984 = vmul.f32 %v983, %v982
    %v985 = vmul.f32 0.5, %v984
    %v986 = vsub.f32 1.5, %v985
    %v987 = vmul.f32 %v982, %v986
    %v988 = vmul.f32 %v980, %v987
    %vm989 = vcmp.eq.f32.partialorder %v980, inf
    %v990 = vsel %vm989, %v980, %v988
    %vm991 = vcmp.eq.f32.partialorder %v980, 0.0
    %v992 = vand.u32 %v980, 2147483648
    %v993 = vsel %vm991, %v992, %v990
    %v994 = vrsqrt.pop %v981
    %v995 = vmul.f32 %v994, %v981
    %v996 = vmul.f32 %v995, %v994
    %v997 = vmul.f32 0.5, %v996
    %v998 = vsub.f32 1.5, %v997
    %v999 = vmul.f32 %v994, %v998
    %v1000 = vmul.f32 %v981, %v999
    %vm1001 = vcmp.eq.f32.partialorder %v981, inf
    %v1002 = vsel %vm1001, %v981, %v1000
    %vm1003 = vcmp.eq.f32.partialorder %v981, 0.0
    %v1004 = vand.u32 %v981, 2147483648
    %v1005 = vsel %vm1003, %v1004, %v1002
    %v1006 = vadd.f32 %v993, 1e-06
    %v1007 = vadd.f32 %v1005, 1e-06
    %v1008 = vrcp.pop %v1006
    %v1009 = vrcp.pop %v1007
    %v1011 = vperm.slane %v960, 0
    %v1013 = vmul.f32 %v1011, %v970
    %v1014 = vmul.f32 %v1011, %v971
    %v1015 = vmul.f32 %v1013, %v1008
    %v1016 = vmul.f32 %v1014, %v1009
    %v1018 = vperm.slane %v961, 0
    %v1020 = vadd.f32 %v1015, %v1018
    %v1021 = vadd.f32 %v1016, %v1018
    %1022 = vst.msk [vmem:[#allocation10] sm:$0xff] %vm123, %v1020
    %1023 = vst.msk [vmem:[#allocation10 + $0x8] sm:$0xff] %vm123, %v1021
    // Predicated region
    $region74: #{tpu_custom_call.1} parent=1 // pred_check
      _
    $region75: #{tpu_custom_call.1} parent=1 // pred_check_branch
      %1025 = sbr.rel (0) target = $region77
    $region76: #{tpu_custom_call.1} parent=1 // pred_region
      %1027 = vsyncadd [#allocation4], 0
      %s1028 = sshll.u32 [#allocation10], 4
      %s1029 = int_to_ptr.vmem [resolvable:$true] %s1028
      %s1030 = sshll.u32 %s14, 4
      %s1031 = int_to_ptr.hbm [resolvable:$true] %s1030
      %1036 = dma.vmem_to_hbm [thread:$0]  %s1029, 256, %s1031, [#allocation4], 128, 128, 8
    $region77: #{tpu_custom_call.1} parent=1 // pred_fallthru
      _
    // Predicated region
    $region78: #{tpu_custom_call.1} parent=1 // pred_check
      _
    $region79: #{tpu_custom_call.1} parent=1 // pred_check_branch
      %1038 = sbr.rel (0) target = $region81
    $region80: #{tpu_custom_call.1} parent=1 // pred_region
      %1040 = dma.done [#allocation4], 256
    $region81: #{tpu_custom_call.1} parent=1 // pred_fallthru
      _
    %1041 = vsyncpa [#allocation3], 1
    %1042 = vsyncpa [#allocation6], 1
    %1043 = vsyncpa [#allocation9], 1
    %1044 = vsyncpa [#allocation4], 1

</llo_original>
